<compile_context>
chip_gen: v6e
topology: v6e:2x2x1
jax: 0.10.0
libtpu: 0.0.40
codegen_flags: <defaults>
</compile_context>

<pallas_src>
import functools

import numpy as np
import jax
import jax.numpy as jnp
from jax.experimental import pallas as pl
from jax.experimental.pallas import tpu as pltpu


F1, F2, F3 = 8, 16, 32          # EEGNet filter counts (fixed by the module)
K1, K2 = 64, 16                 # temporal kernel sizes
PAD1, PAD2 = 32, 8              # temporal paddings


# ----------------------------------------------------------------------------
# Vectorized BatchNorm helpers (batch statistics, biased variance).
# ----------------------------------------------------------------------------
def _bn_rowblocks(v, sel, selt, gamma, beta, count, eps):
    """BN over equal row blocks; block structure encoded by indicator `sel`."""
    f32 = jnp.float32
    s = jnp.dot(sel, jnp.sum(v, axis=1, keepdims=True), preferred_element_type=f32)
    sq = jnp.dot(sel, jnp.sum(v * v, axis=1, keepdims=True), preferred_element_type=f32)
    m = s * (1.0 / count)
    var = sq * (1.0 / count) - m * m
    scale = gamma * jax.lax.rsqrt(var + eps)
    shift = beta - m * scale
    return (v * jnp.dot(selt, scale, preferred_element_type=f32)
            + jnp.dot(selt, shift, preferred_element_type=f32))


def _bn_laneblocks(v, sel, selt, gamma, beta, count, eps):
    """BN over equal lane blocks; block structure encoded by indicator `sel`."""
    f32 = jnp.float32
    s = jnp.dot(jnp.sum(v, axis=0, keepdims=True), selt, preferred_element_type=f32)
    sq = jnp.dot(jnp.sum(v * v, axis=0, keepdims=True), selt, preferred_element_type=f32)
    m = s * (1.0 / count)
    var = sq * (1.0 / count) - m * m
    scale = gamma * jax.lax.rsqrt(var + eps)
    shift = beta - m * scale
    return (v * jnp.dot(scale, sel, preferred_element_type=f32)
            + jnp.dot(shift, sel, preferred_element_type=f32))


# ----------------------------------------------------------------------------
# Pallas kernel: the whole EEGNet forward for one batch (everything in VMEM).
# ----------------------------------------------------------------------------
def eegnet_kernel(x_ref, toe1_ref, dwm_ref, poolrep_ref, poolmask_ref, coll_ref,
                  sepm_ref, sel1_ref, sel1t_ref, sel2_ref, sel2t_ref,
                  sel3_ref, sel3t_ref,
                  bn1g_ref, bn1b_ref, bn2g_ref, bn2b_ref, bn3g_ref, bn3b_ref,
                  p1w_ref, p1b_ref, p2w_ref, p2b_ref, waug_ref, baug_ref,
                  out_ref, *, B, C, T1, W1, eps1, eps2, eps3):
    f32, bf16 = jnp.float32, jnp.bfloat16

    # ---- firstconv: Conv2d(1, 8, (1,64), pad (0,32)) as per-filter Toeplitz
    # matmuls, row-stacked into (F1*B*C, T1) so all downstream ops are single
    # dense matmuls (no per-filter lane slicing anywhere).  Each piece is
    # (B*C, T1); concatenation is along sublanes only.
    xb = x_ref[...]                                                    # (B*C, T) bf16
    y = jnp.concatenate(
        [jnp.dot(xb, toe1_ref[f], preferred_element_type=f32) for f in range(F1)],
        axis=0)                                                        # (F1*B*C, T1) f32

    # ---- BatchNorm2d(8): batch stats per filter over (B, C, T1) -- vectorized
    ybn = _bn_rowblocks(y, sel1_ref[...], sel1t_ref[...],
                        bn1g_ref[...], bn1b_ref[...], float(B * C * T1), eps1)

    # ---- depthwiseConv: Conv2d(8, 16, (C,1), groups=8) as ONE matmul
    z = jnp.dot(dwm_ref[...], ybn.astype(bf16),
                preferred_element_type=f32)                            # (F2*B, T1)

    # ---- BatchNorm2d(16) + ELU (vectorized)
    zbn = _bn_rowblocks(z, sel2_ref[...], sel2t_ref[...],
                        bn2g_ref[...], bn2b_ref[...], float(B * T1), eps2)
    zelu = jnp.where(zbn > 0, zbn, jnp.exp(jnp.minimum(zbn, 0.0)) - 1.0)

    # ---- AvgPool2d((1,4)) + (o,b)->(b, o*W) reorg as dense ops: replicated
    # pool matmul, per-output-channel mask, batch-collapse matmul.
    # (Dropout = identity.)
    pexp = jnp.dot(zelu.astype(bf16), poolrep_ref[...],
                   preferred_element_type=f32)                         # (F2*B, F2*W)
    pooled = jnp.dot(coll_ref[...], pexp * poolmask_ref[...],
                     preferred_element_type=f32)                       # (B, F2*W)

    # ---- separableConv: Conv2d(16, 32, (1,16), pad (0,8)) as ONE Toeplitz matmul
    s = jnp.dot(pooled.astype(bf16), sepm_ref[...],
                preferred_element_type=f32)                            # (B, F3*W1)

    # ---- BatchNorm2d(32) over lane blocks (Dropout = identity)
    sbn = _bn_laneblocks(s, sel3_ref[...], sel3t_ref[...],
                         bn3g_ref[...], bn3b_ref[...], float(B * W1), eps3)

    # ---- flatten + projector (Linear -> ReLU -> Linear)
    e1 = jnp.maximum(
        jnp.dot(sbn.astype(bf16), p1w_ref[...], preferred_element_type=f32)
        + p1b_ref[...], 0.0)
    e2 = jnp.dot(e1, p2w_ref[...], preferred_element_type=f32) + p2b_ref[...]

    # ---- F.normalize(dim=1) via rsqrt + fused [emb | logits] head
    inv = jax.lax.rsqrt(jnp.maximum(jnp.sum(e2 * e2, axis=1, keepdims=True), 1e-24))
    emb = e2 * inv
    out_ref[...] = jnp.dot(emb, waug_ref[...], preferred_element_type=f32) + baug_ref[...]


# ----------------------------------------------------------------------------
# Static matmul-form weight construction (numpy glue, outside the kernel).
# ----------------------------------------------------------------------------
def _toeplitz_first(w1, T, T1):
    # w1: (F1, K1).  toe[f, tp, t] = w1[f, tp + PAD1 - t]  (zero padding folded in)
    toe = np.zeros((F1, T, T1), dtype=np.float32)
    for f in range(F1):
        for t in range(T1):
            for tp in range(T):
                k = tp + PAD1 - t
                if 0 <= k < K1:
                    toe[f, tp, t] = w1[f, k]
    return toe


def _depthwise_mat(wd, B, C):
    # wd: (F2, C).  groups=8 => output channel o reads input filter o//2.
    BC = B * C
    M = np.zeros((F2 * B, F1 * BC), dtype=np.float32)
    for o in range(F2):
        f = o // 2
        for b in range(B):
            M[o * B + b, f * BC + b * C: f * BC + b * C + C] = wd[o]
    return M


def _pool_replicated(T1, W):
    P = np.zeros((T1, F2 * W), dtype=np.float32)
    for o in range(F2):
        for w in range(W):
            P[4 * w:4 * w + 4, o * W + w] = 0.25
    return P


def _pool_mask(B, W):
    M = np.zeros((F2 * B, F2 * W), dtype=np.float32)
    for o in range(F2):
        M[o * B:(o + 1) * B, o * W:(o + 1) * W] = 1.0
    return M


def _collapse_mat(B):
    M = np.zeros((B, F2 * B), dtype=np.float32)
    for o in range(F2):
        for b in range(B):
            M[b, o * B + b] = 1.0
    return M


def _toeplitz_sep(w2, W, W1):
    # w2: (F3, F2, K2).  M[o*W + w, q*W1 + u] = w2[q, o, w + PAD2 - u]
    M = np.zeros((F2 * W, F3 * W1), dtype=np.float32)
    for q in range(F3):
        for o in range(F2):
            for u in range(W1):
                for w in range(W):
                    k = w + PAD2 - u
                    if 0 <= k < K2:
                        M[o * W + w, q * W1 + u] = w2[q, o, k]
    return M


def _block_indicator(nblk, blk):
    S = np.zeros((nblk, nblk * blk), dtype=np.float32)
    for i in range(nblk):
        S[i, i * blk:(i + 1) * blk] = 1.0
    return S


def eegnet_pallas(x, params):
    B, C, T = x.shape
    T1 = T + 1                    # after firstconv (pad 32, kernel 64)
    W = T1 // 4                   # after AvgPool2d((1,4))
    W1 = W + 1                    # after separableConv (pad 8, kernel 16)
    emb_dim = params['p2w'].shape[0]
    ncls = params['cw'].shape[0]
    assert params['p1w'].shape[1] == F3 * W1, "feature_dim mismatch"

    f32, bf16 = jnp.float32, jnp.bfloat16
    w1 = np.asarray(params['w1'], np.float32).reshape(F1, K1)
    wd = np.asarray(params['wd'], np.float32).reshape(F2, C)
    w2 = np.asarray(params['w2'], np.float32).reshape(F3, F2, K2)
    cw = np.asarray(params['cw'], np.float32)
    cb = np.asarray(params['cb'], np.float32)
    waug = np.concatenate([np.eye(emb_dim, dtype=np.float32), cw.T], axis=1)
    baug = np.concatenate([np.zeros((emb_dim,), np.float32), cb])[None, :]

    sel1 = _block_indicator(F1, B * C)
    sel2 = _block_indicator(F2, B)
    sel3 = _block_indicator(F3, W1)

    args = (
        jnp.asarray(x, f32).reshape(B * C, T).astype(bf16),
        jnp.asarray(_toeplitz_first(w1, T, T1), bf16),
        jnp.asarray(_depthwise_mat(wd, B, C), bf16),
        jnp.asarray(_pool_replicated(T1, W), bf16),
        jnp.asarray(_pool_mask(B, W), f32),
        jnp.asarray(_collapse_mat(B), f32),
        jnp.asarray(_toeplitz_sep(w2, W, W1), bf16),
        jnp.asarray(sel1, f32), jnp.asarray(sel1.T, f32),
        jnp.asarray(sel2, f32), jnp.asarray(sel2.T, f32),
        jnp.asarray(sel3, f32), jnp.asarray(sel3.T, f32),
        jnp.asarray(params['bn1g'], f32).reshape(F1, 1),
        jnp.asarray(params['bn1b'], f32).reshape(F1, 1),
        jnp.asarray(params['bn2g'], f32).reshape(F2, 1),
        jnp.asarray(params['bn2b'], f32).reshape(F2, 1),
        jnp.asarray(params['bn3g'], f32).reshape(1, F3),
        jnp.asarray(params['bn3b'], f32).reshape(1, F3),
        jnp.asarray(params['p1w'], f32).T.astype(bf16),
        jnp.asarray(params['p1b'], f32).reshape(1, -1),
        jnp.asarray(params['p2w'], f32).T,
        jnp.asarray(params['p2b'], f32).reshape(1, -1),
        jnp.asarray(waug, f32),
        jnp.asarray(baug, f32),
    )

    kernel = functools.partial(eegnet_kernel, B=B, C=C, T1=T1, W1=W1,
                               eps1=1e-3, eps2=1e-5, eps3=1e-5)
    vmem = pl.BlockSpec(memory_space=pltpu.MemorySpace.VMEM)
    out = pl.pallas_call(
        kernel,
        out_shape=jax.ShapeDtypeStruct((B, emb_dim + ncls), jnp.float32),
        in_specs=[vmem] * len(args),
        out_specs=vmem,
    )(*args)
    return out[:, :emb_dim], out[:, emb_dim:]


# ----------------------------------------------------------------------------
# Deterministic parameter init + pure-JAX reference (for verification only).
# ----------------------------------------------------------------------------
def init_params(key, C, T, emb_dim, num_classes):
    feat = 16 * ((T + 3) // 4) * 2
    ks = jax.random.split(key, 16)

    def n(k, shape, scale):
        return (scale * jax.random.normal(k, shape)).astype(jnp.float32)

    return dict(
        w1=n(ks[0], (8, 1, 1, 64), 1.0 / 8.0),
        wd=n(ks[1], (16, 1, C, 1), 1.0 / np.sqrt(C)),
        w2=n(ks[2], (32, 16, 1, 16), 1.0 / 16.0),
        bn1g=(1.0 + 0.1 * jax.random.normal(ks[3], (8,))).astype(jnp.float32),
        bn1b=n(ks[4], (8,), 0.1),
        bn2g=(1.0 + 0.1 * jax.random.normal(ks[5], (16,))).astype(jnp.float32),
        bn2b=n(ks[6], (16,), 0.1),
        bn3g=(1.0 + 0.1 * jax.random.normal(ks[7], (32,))).astype(jnp.float32),
        bn3b=n(ks[8], (32,), 0.1),
        p1w=n(ks[9], (emb_dim, feat), 1.0 / np.sqrt(feat)),
        p1b=n(ks[10], (emb_dim,), 0.1),
        p2w=n(ks[11], (emb_dim, emb_dim), 1.0 / np.sqrt(emb_dim)),
        p2b=n(ks[12], (emb_dim,), 0.1),
        cw=n(ks[13], (num_classes, emb_dim), 1.0 / np.sqrt(emb_dim)),
        cb=n(ks[14], (num_classes,), 0.1),
    )


def _bn_ref(h, g, b, eps):
    m = jnp.mean(h, axis=(0, 2, 3), keepdims=True)
    v = jnp.mean((h - m) ** 2, axis=(0, 2, 3), keepdims=True)
    return (h - m) * jax.lax.rsqrt(v + eps) * g[None, :, None, None] + b[None, :, None, None]


def eegnet_reference(x, params):
    B, C, T = x.shape
    hp = jax.lax.Precision.HIGHEST
    dn = ('NCHW', 'OIHW', 'NCHW')
    h = jax.lax.conv_general_dilated(x[:, None, :, :], params['w1'], (1, 1),
                                     ((0, 0), (32, 32)), dimension_numbers=dn, precision=hp)
    h = _bn_ref(h, params['bn1g'], params['bn1b'], 1e-3)
    h = jax.lax.conv_general_dilated(h, params['wd'], (1, 1), ((0, 0), (0, 0)),
                                     dimension_numbers=dn, feature_group_count=8, precision=hp)
    h = _bn_ref(h, params['bn2g'], params['bn2b'], 1e-5)
    h = jnp.where(h > 0, h, jnp.exp(jnp.minimum(h, 0.0)) - 1.0)
    T1 = h.shape[-1]
    W = T1 // 4
    h = h[..., :4 * W].reshape(B, 16, 1, W, 4).mean(axis=-1)
    h = jax.lax.conv_general_dilated(h, params['w2'], (1, 1), ((0, 0), (8, 8)),
                                     dimension_numbers=dn, precision=hp)
    h = _bn_ref(h, params['bn3g'], params['bn3b'], 1e-5)
    f = h.reshape(B, -1)
    e1 = jnp.maximum(jnp.dot(f, params['p1w'].T, precision=hp) + params['p1b'], 0.0)
    e2 = jnp.dot(e1, params['p2w'].T, precision=hp) + params['p2b']
    emb = e2 / jnp.maximum(jnp.sqrt(jnp.sum(e2 * e2, axis=1, keepdims=True)), 1e-12)
    logits = jnp.dot(emb, params['cw'].T, precision=hp) + params['cb']
    return emb, logits


if __name__ == "__main__":
    # small shapes: batch=2, num_channels=4, num_timepoints=18 (T % 4 == 2 keeps
    # the module's feature_dim formula consistent), emb_dim=32, num_classes=4
    B, C, T = 2, 4, 18
    emb_dim, num_classes = 32, 4

    key = jax.random.PRNGKey(0)
    kp, kx = jax.random.split(key)
    params = init_params(kp, C, T, emb_dim, num_classes)
    x = jax.random.normal(kx, (B, C, T), dtype=jnp.float32)

    emb, logits = eegnet_pallas(x, params)
    jax.block_until_ready((emb, logits))

    emb_ref, logits_ref = eegnet_reference(x, params)
    # bf16 weights/activations on the MXU path => slightly looser tolerance.
    np.testing.assert_allclose(np.asarray(emb), np.asarray(emb_ref), rtol=3e-2, atol=3e-2)
    np.testing.assert_allclose(np.asarray(logits), np.asarray(logits_ref), rtol=3e-2, atol=3e-2)

    print("KERNEL_OK")
</pallas_src>

<mosaic_0001>
module attributes {stable_mosaic.version = 11 : i64} {
  func.func @eegnet_kernel(%arg0: memref<8x18xbf16, #tpu.memory_space<vmem>>, %arg1: memref<8x18x19xbf16, #tpu.memory_space<vmem>>, %arg2: memref<32x64xbf16, #tpu.memory_space<vmem>>, %arg3: memref<19x64xbf16, #tpu.memory_space<vmem>>, %arg4: memref<32x64xf32, #tpu.memory_space<vmem>>, %arg5: memref<2x32xf32, #tpu.memory_space<vmem>>, %arg6: memref<64x160xbf16, #tpu.memory_space<vmem>>, %arg7: memref<8x64xf32, #tpu.memory_space<vmem>>, %arg8: memref<64x8xf32, #tpu.memory_space<vmem>>, %arg9: memref<16x32xf32, #tpu.memory_space<vmem>>, %arg10: memref<32x16xf32, #tpu.memory_space<vmem>>, %arg11: memref<32x160xf32, #tpu.memory_space<vmem>>, %arg12: memref<160x32xf32, #tpu.memory_space<vmem>>, %arg13: memref<8x1xf32, #tpu.memory_space<vmem>>, %arg14: memref<8x1xf32, #tpu.memory_space<vmem>>, %arg15: memref<16x1xf32, #tpu.memory_space<vmem>>, %arg16: memref<16x1xf32, #tpu.memory_space<vmem>>, %arg17: memref<1x32xf32, #tpu.memory_space<vmem>>, %arg18: memref<1x32xf32, #tpu.memory_space<vmem>>, %arg19: memref<160x32xbf16, #tpu.memory_space<vmem>>, %arg20: memref<1x32xf32, #tpu.memory_space<vmem>>, %arg21: memref<32x32xf32, #tpu.memory_space<vmem>>, %arg22: memref<1x32xf32, #tpu.memory_space<vmem>>, %arg23: memref<32x36xf32, #tpu.memory_space<vmem>>, %arg24: memref<1x36xf32, #tpu.memory_space<vmem>>, %arg25: memref<2x36xf32, #tpu.memory_space<vmem>>) attributes {dimension_semantics = [], scalar_prefetch = 0 : i64, scratch_operands = 0 : i64, tpu.core_type = #tpu.core_type<tc>} {
    %c0 = arith.constant 0 : index
    %c0_0 = arith.constant 0 : index
    %0 = vector.load %arg0[%c0, %c0_0] : memref<8x18xbf16, #tpu.memory_space<vmem>>, vector<8x18xbf16>
    %c0_1 = arith.constant 0 : index
    %c0_2 = arith.constant 0 : index
    %c0_3 = arith.constant 0 : index
    %1 = vector.load %arg1[%c0_1, %c0_2, %c0_3] : memref<8x18x19xbf16, #tpu.memory_space<vmem>>, vector<1x18x19xbf16>
    %2 = vector.shape_cast %1 : vector<1x18x19xbf16> to vector<18x19xbf16>
    %cst = arith.constant dense<0.000000e+00> : vector<8x19xf32>
    %3 = tpu.matmul %0, %2, %cst {dimension_numbers = #tpu.dot_dimension_numbers<[1], [0], [0], [1], [0, 0, 1, 1], [], []>} : vector<8x18xbf16>, vector<18x19xbf16>, vector<8x19xf32> -> vector<8x19xf32>
    %c1 = arith.constant 1 : index
    %c0_4 = arith.constant 0 : index
    %c0_5 = arith.constant 0 : index
    %4 = vector.load %arg1[%c1, %c0_4, %c0_5] : memref<8x18x19xbf16, #tpu.memory_space<vmem>>, vector<1x18x19xbf16>
    %5 = vector.shape_cast %4 : vector<1x18x19xbf16> to vector<18x19xbf16>
    %cst_6 = arith.constant dense<0.000000e+00> : vector<8x19xf32>
    %6 = tpu.matmul %0, %5, %cst_6 {dimension_numbers = #tpu.dot_dimension_numbers<[1], [0], [0], [1], [0, 0, 1, 1], [], []>} : vector<8x18xbf16>, vector<18x19xbf16>, vector<8x19xf32> -> vector<8x19xf32>
    %c2 = arith.constant 2 : index
    %c0_7 = arith.constant 0 : index
    %c0_8 = arith.constant 0 : index
    %7 = vector.load %arg1[%c2, %c0_7, %c0_8] : memref<8x18x19xbf16, #tpu.memory_space<vmem>>, vector<1x18x19xbf16>
    %8 = vector.shape_cast %7 : vector<1x18x19xbf16> to vector<18x19xbf16>
    %cst_9 = arith.constant dense<0.000000e+00> : vector<8x19xf32>
    %9 = tpu.matmul %0, %8, %cst_9 {dimension_numbers = #tpu.dot_dimension_numbers<[1], [0], [0], [1], [0, 0, 1, 1], [], []>} : vector<8x18xbf16>, vector<18x19xbf16>, vector<8x19xf32> -> vector<8x19xf32>
    %c3 = arith.constant 3 : index
    %c0_10 = arith.constant 0 : index
    %c0_11 = arith.constant 0 : index
    %10 = vector.load %arg1[%c3, %c0_10, %c0_11] : memref<8x18x19xbf16, #tpu.memory_space<vmem>>, vector<1x18x19xbf16>
    %11 = vector.shape_cast %10 : vector<1x18x19xbf16> to vector<18x19xbf16>
    %cst_12 = arith.constant dense<0.000000e+00> : vector<8x19xf32>
    %12 = tpu.matmul %0, %11, %cst_12 {dimension_numbers = #tpu.dot_dimension_numbers<[1], [0], [0], [1], [0, 0, 1, 1], [], []>} : vector<8x18xbf16>, vector<18x19xbf16>, vector<8x19xf32> -> vector<8x19xf32>
    %c4 = arith.constant 4 : index
    %c0_13 = arith.constant 0 : index
    %c0_14 = arith.constant 0 : index
    %13 = vector.load %arg1[%c4, %c0_13, %c0_14] : memref<8x18x19xbf16, #tpu.memory_space<vmem>>, vector<1x18x19xbf16>
    %14 = vector.shape_cast %13 : vector<1x18x19xbf16> to vector<18x19xbf16>
    %cst_15 = arith.constant dense<0.000000e+00> : vector<8x19xf32>
    %15 = tpu.matmul %0, %14, %cst_15 {dimension_numbers = #tpu.dot_dimension_numbers<[1], [0], [0], [1], [0, 0, 1, 1], [], []>} : vector<8x18xbf16>, vector<18x19xbf16>, vector<8x19xf32> -> vector<8x19xf32>
    %c5 = arith.constant 5 : index
    %c0_16 = arith.constant 0 : index
    %c0_17 = arith.constant 0 : index
    %16 = vector.load %arg1[%c5, %c0_16, %c0_17] : memref<8x18x19xbf16, #tpu.memory_space<vmem>>, vector<1x18x19xbf16>
    %17 = vector.shape_cast %16 : vector<1x18x19xbf16> to vector<18x19xbf16>
    %cst_18 = arith.constant dense<0.000000e+00> : vector<8x19xf32>
    %18 = tpu.matmul %0, %17, %cst_18 {dimension_numbers = #tpu.dot_dimension_numbers<[1], [0], [0], [1], [0, 0, 1, 1], [], []>} : vector<8x18xbf16>, vector<18x19xbf16>, vector<8x19xf32> -> vector<8x19xf32>
    %c6 = arith.constant 6 : index
    %c0_19 = arith.constant 0 : index
    %c0_20 = arith.constant 0 : index
    %19 = vector.load %arg1[%c6, %c0_19, %c0_20] : memref<8x18x19xbf16, #tpu.memory_space<vmem>>, vector<1x18x19xbf16>
    %20 = vector.shape_cast %19 : vector<1x18x19xbf16> to vector<18x19xbf16>
    %cst_21 = arith.constant dense<0.000000e+00> : vector<8x19xf32>
    %21 = tpu.matmul %0, %20, %cst_21 {dimension_numbers = #tpu.dot_dimension_numbers<[1], [0], [0], [1], [0, 0, 1, 1], [], []>} : vector<8x18xbf16>, vector<18x19xbf16>, vector<8x19xf32> -> vector<8x19xf32>
    %c7 = arith.constant 7 : index
    %c0_22 = arith.constant 0 : index
    %c0_23 = arith.constant 0 : index
    %22 = vector.load %arg1[%c7, %c0_22, %c0_23] : memref<8x18x19xbf16, #tpu.memory_space<vmem>>, vector<1x18x19xbf16>
    %23 = vector.shape_cast %22 : vector<1x18x19xbf16> to vector<18x19xbf16>
    %cst_24 = arith.constant dense<0.000000e+00> : vector<8x19xf32>
    %24 = tpu.matmul %0, %23, %cst_24 {dimension_numbers = #tpu.dot_dimension_numbers<[1], [0], [0], [1], [0, 0, 1, 1], [], []>} : vector<8x18xbf16>, vector<18x19xbf16>, vector<8x19xf32> -> vector<8x19xf32>
    %25 = tpu.concatenate %3, %6, %9, %12, %15, %18, %21, %24 in 0 : vector<8x19xf32>, vector<8x19xf32>, vector<8x19xf32>, vector<8x19xf32>, vector<8x19xf32>, vector<8x19xf32>, vector<8x19xf32>, vector<8x19xf32> -> vector<64x19xf32>
    %c0_25 = arith.constant 0 : index
    %c0_26 = arith.constant 0 : index
    %26 = vector.load %arg7[%c0_25, %c0_26] : memref<8x64xf32, #tpu.memory_space<vmem>>, vector<8x64xf32>
    %c0_27 = arith.constant 0 : index
    %c0_28 = arith.constant 0 : index
    %27 = vector.load %arg8[%c0_27, %c0_28] : memref<64x8xf32, #tpu.memory_space<vmem>>, vector<64x8xf32>
    %c0_29 = arith.constant 0 : index
    %c0_30 = arith.constant 0 : index
    %28 = vector.load %arg13[%c0_29, %c0_30] : memref<8x1xf32, #tpu.memory_space<vmem>>, vector<8x1xf32>
    %c0_31 = arith.constant 0 : index
    %c0_32 = arith.constant 0 : index
    %29 = vector.load %arg14[%c0_31, %c0_32] : memref<8x1xf32, #tpu.memory_space<vmem>>, vector<8x1xf32>
    %cst_33 = arith.constant dense<0.000000e+00> : vector<64xf32>
    %30 = vector.multi_reduction <add>, %25, %cst_33 [1] : vector<64x19xf32> to vector<64xf32>
    %31 = vector.shape_cast %30 : vector<64xf32> to vector<64x1xf32>
    %cst_34 = arith.constant dense<0.000000e+00> : vector<8x1xf32>
    %32 = tpu.matmul %26, %31, %cst_34 {dimension_numbers = #tpu.dot_dimension_numbers<[1], [0], [0], [1], [0, 0, 1, 1], [], []>} : vector<8x64xf32>, vector<64x1xf32>, vector<8x1xf32> -> vector<8x1xf32>
    %33 = arith.mulf %25, %25 : vector<64x19xf32>
    %cst_35 = arith.constant dense<0.000000e+00> : vector<64xf32>
    %34 = vector.multi_reduction <add>, %33, %cst_35 [1] : vector<64x19xf32> to vector<64xf32>
    %35 = vector.shape_cast %34 : vector<64xf32> to vector<64x1xf32>
    %cst_36 = arith.constant dense<0.000000e+00> : vector<8x1xf32>
    %36 = tpu.matmul %26, %35, %cst_36 {dimension_numbers = #tpu.dot_dimension_numbers<[1], [0], [0], [1], [0, 0, 1, 1], [], []>} : vector<8x64xf32>, vector<64x1xf32>, vector<8x1xf32> -> vector<8x1xf32>
    %cst_37 = arith.constant 0.00657894742 : f32
    %37 = vector.broadcast %cst_37 : f32 to vector<8x1xf32>
    %38 = arith.mulf %32, %37 : vector<8x1xf32>
    %cst_38 = arith.constant 0.00657894742 : f32
    %39 = vector.broadcast %cst_38 : f32 to vector<8x1xf32>
    %40 = arith.mulf %36, %39 : vector<8x1xf32>
    %41 = arith.mulf %38, %38 : vector<8x1xf32>
    %42 = arith.subf %40, %41 : vector<8x1xf32>
    %cst_39 = arith.constant 1.000000e-03 : f32
    %43 = vector.broadcast %cst_39 : f32 to vector<8x1xf32>
    %44 = arith.addf %42, %43 : vector<8x1xf32>
    %45 = math.rsqrt %44 : vector<8x1xf32>
    %46 = arith.mulf %28, %45 : vector<8x1xf32>
    %47 = arith.mulf %38, %46 : vector<8x1xf32>
    %48 = arith.subf %29, %47 : vector<8x1xf32>
    %cst_40 = arith.constant dense<0.000000e+00> : vector<64x1xf32>
    %49 = tpu.matmul %27, %46, %cst_40 {dimension_numbers = #tpu.dot_dimension_numbers<[1], [0], [0], [1], [0, 0, 1, 1], [], []>} : vector<64x8xf32>, vector<8x1xf32>, vector<64x1xf32> -> vector<64x1xf32>
    %50 = vector.broadcast %49 : vector<64x1xf32> to vector<64x19xf32>
    %51 = arith.mulf %25, %50 : vector<64x19xf32>
    %cst_41 = arith.constant dense<0.000000e+00> : vector<64x1xf32>
    %52 = tpu.matmul %27, %48, %cst_41 {dimension_numbers = #tpu.dot_dimension_numbers<[1], [0], [0], [1], [0, 0, 1, 1], [], []>} : vector<64x8xf32>, vector<8x1xf32>, vector<64x1xf32> -> vector<64x1xf32>
    %53 = vector.broadcast %52 : vector<64x1xf32> to vector<64x19xf32>
    %54 = arith.addf %51, %53 : vector<64x19xf32>
    %c0_42 = arith.constant 0 : index
    %c0_43 = arith.constant 0 : index
    %55 = vector.load %arg2[%c0_42, %c0_43] : memref<32x64xbf16, #tpu.memory_space<vmem>>, vector<32x64xbf16>
    %56 = arith.truncf %54 : vector<64x19xf32> to vector<64x19xbf16>
    %cst_44 = arith.constant dense<0.000000e+00> : vector<32x19xf32>
    %57 = tpu.matmul %55, %56, %cst_44 {dimension_numbers = #tpu.dot_dimension_numbers<[1], [0], [0], [1], [0, 0, 1, 1], [], []>} : vector<32x64xbf16>, vector<64x19xbf16>, vector<32x19xf32> -> vector<32x19xf32>
    %c0_45 = arith.constant 0 : index
    %c0_46 = arith.constant 0 : index
    %58 = vector.load %arg9[%c0_45, %c0_46] : memref<16x32xf32, #tpu.memory_space<vmem>>, vector<16x32xf32>
    %c0_47 = arith.constant 0 : index
    %c0_48 = arith.constant 0 : index
    %59 = vector.load %arg10[%c0_47, %c0_48] : memref<32x16xf32, #tpu.memory_space<vmem>>, vector<32x16xf32>
    %c0_49 = arith.constant 0 : index
    %c0_50 = arith.constant 0 : index
    %60 = vector.load %arg15[%c0_49, %c0_50] : memref<16x1xf32, #tpu.memory_space<vmem>>, vector<16x1xf32>
    %c0_51 = arith.constant 0 : index
    %c0_52 = arith.constant 0 : index
    %61 = vector.load %arg16[%c0_51, %c0_52] : memref<16x1xf32, #tpu.memory_space<vmem>>, vector<16x1xf32>
    %cst_53 = arith.constant dense<0.000000e+00> : vector<32xf32>
    %62 = vector.multi_reduction <add>, %57, %cst_53 [1] : vector<32x19xf32> to vector<32xf32>
    %63 = vector.shape_cast %62 : vector<32xf32> to vector<32x1xf32>
    %cst_54 = arith.constant dense<0.000000e+00> : vector<16x1xf32>
    %64 = tpu.matmul %58, %63, %cst_54 {dimension_numbers = #tpu.dot_dimension_numbers<[1], [0], [0], [1], [0, 0, 1, 1], [], []>} : vector<16x32xf32>, vector<32x1xf32>, vector<16x1xf32> -> vector<16x1xf32>
    %65 = arith.mulf %57, %57 : vector<32x19xf32>
    %cst_55 = arith.constant dense<0.000000e+00> : vector<32xf32>
    %66 = vector.multi_reduction <add>, %65, %cst_55 [1] : vector<32x19xf32> to vector<32xf32>
    %67 = vector.shape_cast %66 : vector<32xf32> to vector<32x1xf32>
    %cst_56 = arith.constant dense<0.000000e+00> : vector<16x1xf32>
    %68 = tpu.matmul %58, %67, %cst_56 {dimension_numbers = #tpu.dot_dimension_numbers<[1], [0], [0], [1], [0, 0, 1, 1], [], []>} : vector<16x32xf32>, vector<32x1xf32>, vector<16x1xf32> -> vector<16x1xf32>
    %cst_57 = arith.constant 0.0263157897 : f32
    %69 = vector.broadcast %cst_57 : f32 to vector<16x1xf32>
    %70 = arith.mulf %64, %69 : vector<16x1xf32>
    %cst_58 = arith.constant 0.0263157897 : f32
    %71 = vector.broadcast %cst_58 : f32 to vector<16x1xf32>
    %72 = arith.mulf %68, %71 : vector<16x1xf32>
    %73 = arith.mulf %70, %70 : vector<16x1xf32>
    %74 = arith.subf %72, %73 : vector<16x1xf32>
    %cst_59 = arith.constant 9.99999974E-6 : f32
    %75 = vector.broadcast %cst_59 : f32 to vector<16x1xf32>
    %76 = arith.addf %74, %75 : vector<16x1xf32>
    %77 = math.rsqrt %76 : vector<16x1xf32>
    %78 = arith.mulf %60, %77 : vector<16x1xf32>
    %79 = arith.mulf %70, %78 : vector<16x1xf32>
    %80 = arith.subf %61, %79 : vector<16x1xf32>
    %cst_60 = arith.constant dense<0.000000e+00> : vector<32x1xf32>
    %81 = tpu.matmul %59, %78, %cst_60 {dimension_numbers = #tpu.dot_dimension_numbers<[1], [0], [0], [1], [0, 0, 1, 1], [], []>} : vector<32x16xf32>, vector<16x1xf32>, vector<32x1xf32> -> vector<32x1xf32>
    %82 = vector.broadcast %81 : vector<32x1xf32> to vector<32x19xf32>
    %83 = arith.mulf %57, %82 : vector<32x19xf32>
    %cst_61 = arith.constant dense<0.000000e+00> : vector<32x1xf32>
    %84 = tpu.matmul %59, %80, %cst_61 {dimension_numbers = #tpu.dot_dimension_numbers<[1], [0], [0], [1], [0, 0, 1, 1], [], []>} : vector<32x16xf32>, vector<16x1xf32>, vector<32x1xf32> -> vector<32x1xf32>
    %85 = vector.broadcast %84 : vector<32x1xf32> to vector<32x19xf32>
    %86 = arith.addf %83, %85 : vector<32x19xf32>
    %cst_62 = arith.constant 0.000000e+00 : f32
    %87 = vector.broadcast %cst_62 : f32 to vector<32x19xf32>
    %88 = arith.cmpf ogt, %86, %87 : vector<32x19xf32>
    %cst_63 = arith.constant 0.000000e+00 : f32
    %89 = vector.broadcast %cst_63 : f32 to vector<32x19xf32>
    %90 = arith.minimumf %86, %89 : vector<32x19xf32>
    %91 = math.exp %90 : vector<32x19xf32>
    %cst_64 = arith.constant 1.000000e+00 : f32
    %92 = vector.broadcast %cst_64 : f32 to vector<32x19xf32>
    %93 = arith.subf %91, %92 : vector<32x19xf32>
    %94 = arith.select %88, %86, %93 : vector<32x19xi1>, vector<32x19xf32>
    %95 = arith.truncf %94 : vector<32x19xf32> to vector<32x19xbf16>
    %c0_65 = arith.constant 0 : index
    %c0_66 = arith.constant 0 : index
    %96 = vector.load %arg3[%c0_65, %c0_66] : memref<19x64xbf16, #tpu.memory_space<vmem>>, vector<19x64xbf16>
    %cst_67 = arith.constant dense<0.000000e+00> : vector<32x64xf32>
    %97 = tpu.matmul %95, %96, %cst_67 {dimension_numbers = #tpu.dot_dimension_numbers<[1], [0], [0], [1], [0, 0, 1, 1], [], []>} : vector<32x19xbf16>, vector<19x64xbf16>, vector<32x64xf32> -> vector<32x64xf32>
    %c0_68 = arith.constant 0 : index
    %c0_69 = arith.constant 0 : index
    %98 = vector.load %arg5[%c0_68, %c0_69] : memref<2x32xf32, #tpu.memory_space<vmem>>, vector<2x32xf32>
    %c0_70 = arith.constant 0 : index
    %c0_71 = arith.constant 0 : index
    %99 = vector.load %arg4[%c0_70, %c0_71] : memref<32x64xf32, #tpu.memory_space<vmem>>, vector<32x64xf32>
    %100 = arith.mulf %97, %99 : vector<32x64xf32>
    %cst_72 = arith.constant dense<0.000000e+00> : vector<2x64xf32>
    %101 = tpu.matmul %98, %100, %cst_72 {dimension_numbers = #tpu.dot_dimension_numbers<[1], [0], [0], [1], [0, 0, 1, 1], [], []>} : vector<2x32xf32>, vector<32x64xf32>, vector<2x64xf32> -> vector<2x64xf32>
    %102 = arith.truncf %101 : vector<2x64xf32> to vector<2x64xbf16>
    %c0_73 = arith.constant 0 : index
    %c0_74 = arith.constant 0 : index
    %103 = vector.load %arg6[%c0_73, %c0_74] : memref<64x160xbf16, #tpu.memory_space<vmem>>, vector<64x160xbf16>
    %cst_75 = arith.constant dense<0.000000e+00> : vector<2x160xf32>
    %104 = tpu.matmul %102, %103, %cst_75 {dimension_numbers = #tpu.dot_dimension_numbers<[1], [0], [0], [1], [0, 0, 1, 1], [], []>} : vector<2x64xbf16>, vector<64x160xbf16>, vector<2x160xf32> -> vector<2x160xf32>
    %c0_76 = arith.constant 0 : index
    %c0_77 = arith.constant 0 : index
    %105 = vector.load %arg11[%c0_76, %c0_77] : memref<32x160xf32, #tpu.memory_space<vmem>>, vector<32x160xf32>
    %c0_78 = arith.constant 0 : index
    %c0_79 = arith.constant 0 : index
    %106 = vector.load %arg12[%c0_78, %c0_79] : memref<160x32xf32, #tpu.memory_space<vmem>>, vector<160x32xf32>
    %c0_80 = arith.constant 0 : index
    %c0_81 = arith.constant 0 : index
    %107 = vector.load %arg17[%c0_80, %c0_81] : memref<1x32xf32, #tpu.memory_space<vmem>>, vector<1x32xf32>
    %c0_82 = arith.constant 0 : index
    %c0_83 = arith.constant 0 : index
    %108 = vector.load %arg18[%c0_82, %c0_83] : memref<1x32xf32, #tpu.memory_space<vmem>>, vector<1x32xf32>
    %cst_84 = arith.constant dense<0.000000e+00> : vector<160xf32>
    %109 = vector.multi_reduction <add>, %104, %cst_84 [0] : vector<2x160xf32> to vector<160xf32>
    %110 = vector.shape_cast %109 : vector<160xf32> to vector<1x160xf32>
    %cst_85 = arith.constant dense<0.000000e+00> : vector<1x32xf32>
    %111 = tpu.matmul %110, %106, %cst_85 {dimension_numbers = #tpu.dot_dimension_numbers<[1], [0], [0], [1], [0, 0, 1, 1], [], []>} : vector<1x160xf32>, vector<160x32xf32>, vector<1x32xf32> -> vector<1x32xf32>
    %112 = arith.mulf %104, %104 : vector<2x160xf32>
    %cst_86 = arith.constant dense<0.000000e+00> : vector<160xf32>
    %113 = vector.multi_reduction <add>, %112, %cst_86 [0] : vector<2x160xf32> to vector<160xf32>
    %114 = vector.shape_cast %113 : vector<160xf32> to vector<1x160xf32>
    %cst_87 = arith.constant dense<0.000000e+00> : vector<1x32xf32>
    %115 = tpu.matmul %114, %106, %cst_87 {dimension_numbers = #tpu.dot_dimension_numbers<[1], [0], [0], [1], [0, 0, 1, 1], [], []>} : vector<1x160xf32>, vector<160x32xf32>, vector<1x32xf32> -> vector<1x32xf32>
    %cst_88 = arith.constant 1.000000e-01 : f32
    %116 = vector.broadcast %cst_88 : f32 to vector<1x32xf32>
    %117 = arith.mulf %111, %116 : vector<1x32xf32>
    %cst_89 = arith.constant 1.000000e-01 : f32
    %118 = vector.broadcast %cst_89 : f32 to vector<1x32xf32>
    %119 = arith.mulf %115, %118 : vector<1x32xf32>
    %120 = arith.mulf %117, %117 : vector<1x32xf32>
    %121 = arith.subf %119, %120 : vector<1x32xf32>
    %cst_90 = arith.constant 9.99999974E-6 : f32
    %122 = vector.broadcast %cst_90 : f32 to vector<1x32xf32>
    %123 = arith.addf %121, %122 : vector<1x32xf32>
    %124 = math.rsqrt %123 : vector<1x32xf32>
    %125 = arith.mulf %107, %124 : vector<1x32xf32>
    %126 = arith.mulf %117, %125 : vector<1x32xf32>
    %127 = arith.subf %108, %126 : vector<1x32xf32>
    %cst_91 = arith.constant dense<0.000000e+00> : vector<1x160xf32>
    %128 = tpu.matmul %125, %105, %cst_91 {dimension_numbers = #tpu.dot_dimension_numbers<[1], [0], [0], [1], [0, 0, 1, 1], [], []>} : vector<1x32xf32>, vector<32x160xf32>, vector<1x160xf32> -> vector<1x160xf32>
    %129 = vector.broadcast %128 : vector<1x160xf32> to vector<2x160xf32>
    %130 = arith.mulf %104, %129 : vector<2x160xf32>
    %cst_92 = arith.constant dense<0.000000e+00> : vector<1x160xf32>
    %131 = tpu.matmul %127, %105, %cst_92 {dimension_numbers = #tpu.dot_dimension_numbers<[1], [0], [0], [1], [0, 0, 1, 1], [], []>} : vector<1x32xf32>, vector<32x160xf32>, vector<1x160xf32> -> vector<1x160xf32>
    %132 = vector.broadcast %131 : vector<1x160xf32> to vector<2x160xf32>
    %133 = arith.addf %130, %132 : vector<2x160xf32>
    %134 = arith.truncf %133 : vector<2x160xf32> to vector<2x160xbf16>
    %c0_93 = arith.constant 0 : index
    %c0_94 = arith.constant 0 : index
    %135 = vector.load %arg19[%c0_93, %c0_94] : memref<160x32xbf16, #tpu.memory_space<vmem>>, vector<160x32xbf16>
    %cst_95 = arith.constant dense<0.000000e+00> : vector<2x32xf32>
    %136 = tpu.matmul %134, %135, %cst_95 {dimension_numbers = #tpu.dot_dimension_numbers<[1], [0], [0], [1], [0, 0, 1, 1], [], []>} : vector<2x160xbf16>, vector<160x32xbf16>, vector<2x32xf32> -> vector<2x32xf32>
    %c0_96 = arith.constant 0 : index
    %c0_97 = arith.constant 0 : index
    %137 = vector.load %arg20[%c0_96, %c0_97] : memref<1x32xf32, #tpu.memory_space<vmem>>, vector<1x32xf32>
    %138 = vector.broadcast %137 : vector<1x32xf32> to vector<2x32xf32>
    %139 = arith.addf %136, %138 : vector<2x32xf32>
    %cst_98 = arith.constant 0.000000e+00 : f32
    %140 = vector.broadcast %cst_98 : f32 to vector<2x32xf32>
    %141 = arith.maximumf %139, %140 : vector<2x32xf32>
    %c0_99 = arith.constant 0 : index
    %c0_100 = arith.constant 0 : index
    %142 = vector.load %arg21[%c0_99, %c0_100] : memref<32x32xf32, #tpu.memory_space<vmem>>, vector<32x32xf32>
    %cst_101 = arith.constant dense<0.000000e+00> : vector<2x32xf32>
    %143 = tpu.matmul %141, %142, %cst_101 {dimension_numbers = #tpu.dot_dimension_numbers<[1], [0], [0], [1], [0, 0, 1, 1], [], []>} : vector<2x32xf32>, vector<32x32xf32>, vector<2x32xf32> -> vector<2x32xf32>
    %c0_102 = arith.constant 0 : index
    %c0_103 = arith.constant 0 : index
    %144 = vector.load %arg22[%c0_102, %c0_103] : memref<1x32xf32, #tpu.memory_space<vmem>>, vector<1x32xf32>
    %145 = vector.broadcast %144 : vector<1x32xf32> to vector<2x32xf32>
    %146 = arith.addf %143, %145 : vector<2x32xf32>
    %147 = arith.mulf %146, %146 : vector<2x32xf32>
    %cst_104 = arith.constant dense<0.000000e+00> : vector<2xf32>
    %148 = vector.multi_reduction <add>, %147, %cst_104 [1] : vector<2x32xf32> to vector<2xf32>
    %149 = vector.shape_cast %148 : vector<2xf32> to vector<2x1xf32>
    %cst_105 = arith.constant 1.000000e-24 : f32
    %150 = vector.broadcast %cst_105 : f32 to vector<2x1xf32>
    %151 = arith.maximumf %149, %150 : vector<2x1xf32>
    %152 = math.rsqrt %151 : vector<2x1xf32>
    %153 = vector.broadcast %152 : vector<2x1xf32> to vector<2x32xf32>
    %154 = arith.mulf %146, %153 : vector<2x32xf32>
    %c0_106 = arith.constant 0 : index
    %c0_107 = arith.constant 0 : index
    %155 = vector.load %arg23[%c0_106, %c0_107] : memref<32x36xf32, #tpu.memory_space<vmem>>, vector<32x36xf32>
    %cst_108 = arith.constant dense<0.000000e+00> : vector<2x36xf32>
    %156 = tpu.matmul %154, %155, %cst_108 {dimension_numbers = #tpu.dot_dimension_numbers<[1], [0], [0], [1], [0, 0, 1, 1], [], []>} : vector<2x32xf32>, vector<32x36xf32>, vector<2x36xf32> -> vector<2x36xf32>
    %c0_109 = arith.constant 0 : index
    %c0_110 = arith.constant 0 : index
    %157 = vector.load %arg24[%c0_109, %c0_110] : memref<1x36xf32, #tpu.memory_space<vmem>>, vector<1x36xf32>
    %158 = vector.broadcast %157 : vector<1x36xf32> to vector<2x36xf32>
    %159 = arith.addf %156, %158 : vector<2x36xf32>
    %c0_111 = arith.constant 0 : index
    %c0_112 = arith.constant 0 : index
    %160 = vector.load %arg25[%c0_111, %c0_112] : memref<2x36xf32, #tpu.memory_space<vmem>>, vector<2x36xf32>
    tpu.vector_store %arg25[%c0_111, %c0_112], %159 {strides = array<i32>} : memref<2x36xf32, #tpu.memory_space<vmem>>, vector<2x36xf32>,
    return
  }
}

</mosaic_0001>

<llo_original>
// kernel: tpu_custom_call.1
$region0: #{tpu_custom_call.1}
  #allocation0 [shape = 'u32[]', space=smem, size = 0x4, offset = 0x4, fixed_abs, tag = 'smem constant byte address 0x4 - core index']
  #allocation1 [shape = 'u32[144,128]{1,0:T(1,128)}', space=vmem, size = 0x12000, scoped, tag = 'internal scratch']
  %s0 = inlined_call_operand.vmem [shape: bf16[8,18], index: 0, kind: input, shape index: {}]
  %s1 = inlined_call_operand.vmem [shape: bf16[8,18,19], index: 1, kind: input, shape index: {}]
  %s2 = inlined_call_operand.vmem [shape: bf16[32,64], index: 2, kind: input, shape index: {}]
  %s3 = inlined_call_operand.vmem [shape: bf16[19,64], index: 3, kind: input, shape index: {}]
  %s4 = inlined_call_operand.vmem [shape: f32[32,64], index: 4, kind: input, shape index: {}]
  %s5 = inlined_call_operand.vmem [shape: f32[2,32], index: 5, kind: input, shape index: {}]
  %s6 = inlined_call_operand.vmem [shape: bf16[64,160], index: 6, kind: input, shape index: {}]
  %s7 = inlined_call_operand.vmem [shape: f32[8,64], index: 7, kind: input, shape index: {}]
  %s8 = inlined_call_operand.vmem [shape: f32[64,8], index: 8, kind: input, shape index: {}]
  %s9 = inlined_call_operand.vmem [shape: f32[16,32], index: 9, kind: input, shape index: {}]
  %s10 = inlined_call_operand.vmem [shape: f32[32,16], index: 10, kind: input, shape index: {}]
  %s11 = inlined_call_operand.vmem [shape: f32[32,160], index: 11, kind: input, shape index: {}]
  %s12 = inlined_call_operand.vmem [shape: f32[160,32], index: 12, kind: input, shape index: {}]
  %s13 = inlined_call_operand.vmem [shape: f32[8,1], index: 13, kind: input, shape index: {}]
  %s14 = inlined_call_operand.vmem [shape: f32[8,1], index: 14, kind: input, shape index: {}]
  %s15 = inlined_call_operand.vmem [shape: f32[16,1], index: 15, kind: input, shape index: {}]
  %s16 = inlined_call_operand.vmem [shape: f32[16,1], index: 16, kind: input, shape index: {}]
  %s17 = inlined_call_operand.vmem [shape: f32[1,32], index: 17, kind: input, shape index: {}]
  %s18 = inlined_call_operand.vmem [shape: f32[1,32], index: 18, kind: input, shape index: {}]
  %s19 = inlined_call_operand.vmem [shape: bf16[160,32], index: 19, kind: input, shape index: {}]
  %s20 = inlined_call_operand.vmem [shape: f32[1,32], index: 20, kind: input, shape index: {}]
  %s21 = inlined_call_operand.vmem [shape: f32[32,32], index: 21, kind: input, shape index: {}]
  %s22 = inlined_call_operand.vmem [shape: f32[1,32], index: 22, kind: input, shape index: {}]
  %s23 = inlined_call_operand.vmem [shape: f32[32,36], index: 23, kind: input, shape index: {}]
  %s24 = inlined_call_operand.vmem [shape: f32[1,36], index: 24, kind: input, shape index: {}]
  %s25 = inlined_call_operand.hbm [shape: f32[2,36], index: 25, kind: output, shape index: {}]
  %s26 = sld [smem:[#allocation0]]
  $region110: #{tpu_custom_call.1} parent=0
    _
  %s28 = ssub.s32 1, %s26
  %s29 = scalar_select 0, %s28, %s26
  $region1: #{tpu_custom_call.1} parent=0
    #allocation2 [shape = 'u8[1024]{0}', space=vmem, size = 0x400, scoped, tag = 'output window, operand 0, single buffered']
    #allocation3 [shape = 's32[1]{0}', space=sflag, size = 0x4, scoped, tag = 'scoped memory for tpu_custom_call.1']
    %30 = vsyncpa [#allocation3], 0
    // Predicated region
    $region2: #{tpu_custom_call.1} parent=1 // pred_check
      _
    $region3: #{tpu_custom_call.1} parent=1 // pred_check_branch
      %32 = sbr.rel (0) target = $region5
    $region4: #{tpu_custom_call.1} parent=1 // pred_region
      _
    $region5: #{tpu_custom_call.1} parent=1 // pred_fallthru
      _
    // Predicated region
    $region6: #{tpu_custom_call.1} parent=1 // pred_check
      _
    $region7: #{tpu_custom_call.1} parent=1 // pred_check_branch
      %34 = sbr.rel (0) target = $region9
    $region8: #{tpu_custom_call.1} parent=1 // pred_region
      _
    $region9: #{tpu_custom_call.1} parent=1 // pred_fallthru
      _
    // Predicated region
    $region10: #{tpu_custom_call.1} parent=1 // pred_check
      _
    $region11: #{tpu_custom_call.1} parent=1 // pred_check_branch
      %36 = sbr.rel (0) target = $region13
    $region12: #{tpu_custom_call.1} parent=1 // pred_region
      _
    $region13: #{tpu_custom_call.1} parent=1 // pred_fallthru
      _
    // Predicated region
    $region14: #{tpu_custom_call.1} parent=1 // pred_check
      _
    $region15: #{tpu_custom_call.1} parent=1 // pred_check_branch
      %38 = sbr.rel (0) target = $region17
    $region16: #{tpu_custom_call.1} parent=1 // pred_region
      _
    $region17: #{tpu_custom_call.1} parent=1 // pred_fallthru
      _
    // Predicated region
    $region18: #{tpu_custom_call.1} parent=1 // pred_check
      _
    $region19: #{tpu_custom_call.1} parent=1 // pred_check_branch
      %40 = sbr.rel (0) target = $region21
    $region20: #{tpu_custom_call.1} parent=1 // pred_region
      _
    $region21: #{tpu_custom_call.1} parent=1 // pred_fallthru
      _
    // Predicated region
    $region22: #{tpu_custom_call.1} parent=1 // pred_check
      _
    $region23: #{tpu_custom_call.1} parent=1 // pred_check_branch
      %42 = sbr.rel (0) target = $region25
    $region24: #{tpu_custom_call.1} parent=1 // pred_region
      _
    $region25: #{tpu_custom_call.1} parent=1 // pred_fallthru
      _
    // Predicated region
    $region26: #{tpu_custom_call.1} parent=1 // pred_check
      _
    $region27: #{tpu_custom_call.1} parent=1 // pred_check_branch
      %44 = sbr.rel (0) target = $region29
    $region28: #{tpu_custom_call.1} parent=1 // pred_region
      _
    $region29: #{tpu_custom_call.1} parent=1 // pred_fallthru
      _
    // Predicated region
    $region30: #{tpu_custom_call.1} parent=1 // pred_check
      _
    $region31: #{tpu_custom_call.1} parent=1 // pred_check_branch
      %46 = sbr.rel (0) target = $region33
    $region32: #{tpu_custom_call.1} parent=1 // pred_region
      _
    $region33: #{tpu_custom_call.1} parent=1 // pred_fallthru
      _
    // Predicated region
    $region34: #{tpu_custom_call.1} parent=1 // pred_check
      _
    $region35: #{tpu_custom_call.1} parent=1 // pred_check_branch
      %48 = sbr.rel (0) target = $region37
    $region36: #{tpu_custom_call.1} parent=1 // pred_region
      _
    $region37: #{tpu_custom_call.1} parent=1 // pred_fallthru
      _
    // Predicated region
    $region38: #{tpu_custom_call.1} parent=1 // pred_check
      _
    $region39: #{tpu_custom_call.1} parent=1 // pred_check_branch
      %50 = sbr.rel (0) target = $region41
    $region40: #{tpu_custom_call.1} parent=1 // pred_region
      _
    $region41: #{tpu_custom_call.1} parent=1 // pred_fallthru
      _
    // Predicated region
    $region42: #{tpu_custom_call.1} parent=1 // pred_check
      _
    $region43: #{tpu_custom_call.1} parent=1 // pred_check_branch
      %52 = sbr.rel (0) target = $region45
    $region44: #{tpu_custom_call.1} parent=1 // pred_region
      _
    $region45: #{tpu_custom_call.1} parent=1 // pred_fallthru
      _
    // Predicated region
    $region46: #{tpu_custom_call.1} parent=1 // pred_check
      _
    $region47: #{tpu_custom_call.1} parent=1 // pred_check_branch
      %54 = sbr.rel (0) target = $region49
    $region48: #{tpu_custom_call.1} parent=1 // pred_region
      _
    $region49: #{tpu_custom_call.1} parent=1 // pred_fallthru
      _
    // Predicated region
    $region50: #{tpu_custom_call.1} parent=1 // pred_check
      _
    $region51: #{tpu_custom_call.1} parent=1 // pred_check_branch
      %56 = sbr.rel (0) target = $region53
    $region52: #{tpu_custom_call.1} parent=1 // pred_region
      _
    $region53: #{tpu_custom_call.1} parent=1 // pred_fallthru
      _
    // Predicated region
    $region54: #{tpu_custom_call.1} parent=1 // pred_check
      _
    $region55: #{tpu_custom_call.1} parent=1 // pred_check_branch
      %58 = sbr.rel (0) target = $region57
    $region56: #{tpu_custom_call.1} parent=1 // pred_region
      _
    $region57: #{tpu_custom_call.1} parent=1 // pred_fallthru
      _
    // Predicated region
    $region58: #{tpu_custom_call.1} parent=1 // pred_check
      _
    $region59: #{tpu_custom_call.1} parent=1 // pred_check_branch
      %60 = sbr.rel (0) target = $region61
    $region60: #{tpu_custom_call.1} parent=1 // pred_region
      _
    $region61: #{tpu_custom_call.1} parent=1 // pred_fallthru
      _
    // Predicated region
    $region62: #{tpu_custom_call.1} parent=1 // pred_check
      _
    $region63: #{tpu_custom_call.1} parent=1 // pred_check_branch
      %62 = sbr.rel (0) target = $region65
    $region64: #{tpu_custom_call.1} parent=1 // pred_region
      _
    $region65: #{tpu_custom_call.1} parent=1 // pred_fallthru
      _
    // Predicated region
    $region66: #{tpu_custom_call.1} parent=1 // pred_check
      _
    $region67: #{tpu_custom_call.1} parent=1 // pred_check_branch
      %64 = sbr.rel (0) target = $region69
    $region68: #{tpu_custom_call.1} parent=1 // pred_region
      _
    $region69: #{tpu_custom_call.1} parent=1 // pred_fallthru
      _
    // Predicated region
    $region70: #{tpu_custom_call.1} parent=1 // pred_check
      _
    $region71: #{tpu_custom_call.1} parent=1 // pred_check_branch
      %66 = sbr.rel (0) target = $region73
    $region72: #{tpu_custom_call.1} parent=1 // pred_region
      _
    $region73: #{tpu_custom_call.1} parent=1 // pred_fallthru
      _
    // Predicated region
    $region74: #{tpu_custom_call.1} parent=1 // pred_check
      _
    $region75: #{tpu_custom_call.1} parent=1 // pred_check_branch
      %68 = sbr.rel (0) target = $region77
    $region76: #{tpu_custom_call.1} parent=1 // pred_region
      _
    $region77: #{tpu_custom_call.1} parent=1 // pred_fallthru
      _
    // Predicated region
    $region78: #{tpu_custom_call.1} parent=1 // pred_check
      _
    $region79: #{tpu_custom_call.1} parent=1 // pred_check_branch
      %70 = sbr.rel (0) target = $region81
    $region80: #{tpu_custom_call.1} parent=1 // pred_region
      _
    $region81: #{tpu_custom_call.1} parent=1 // pred_fallthru
      _
    // Predicated region
    $region82: #{tpu_custom_call.1} parent=1 // pred_check
      _
    $region83: #{tpu_custom_call.1} parent=1 // pred_check_branch
      %72 = sbr.rel (0) target = $region85
    $region84: #{tpu_custom_call.1} parent=1 // pred_region
      _
    $region85: #{tpu_custom_call.1} parent=1 // pred_fallthru
      _
    // Predicated region
    $region86: #{tpu_custom_call.1} parent=1 // pred_check
      _
    $region87: #{tpu_custom_call.1} parent=1 // pred_check_branch
      %74 = sbr.rel (0) target = $region89
    $region88: #{tpu_custom_call.1} parent=1 // pred_region
      _
    $region89: #{tpu_custom_call.1} parent=1 // pred_fallthru
      _
    // Predicated region
    $region90: #{tpu_custom_call.1} parent=1 // pred_check
      _
    $region91: #{tpu_custom_call.1} parent=1 // pred_check_branch
      %76 = sbr.rel (0) target = $region93
    $region92: #{tpu_custom_call.1} parent=1 // pred_region
      _
    $region93: #{tpu_custom_call.1} parent=1 // pred_fallthru
      _
    // Predicated region
    $region94: #{tpu_custom_call.1} parent=1 // pred_check
      _
    $region95: #{tpu_custom_call.1} parent=1 // pred_check_branch
      %78 = sbr.rel (0) target = $region97
    $region96: #{tpu_custom_call.1} parent=1 // pred_region
      _
    $region97: #{tpu_custom_call.1} parent=1 // pred_fallthru
      _
    // Predicated region
    $region98: #{tpu_custom_call.1} parent=1 // pred_check
      _
    $region99: #{tpu_custom_call.1} parent=1 // pred_check_branch
      %80 = sbr.rel (0) target = $region101
    $region100: #{tpu_custom_call.1} parent=1 // pred_region
      _
    $region101: #{tpu_custom_call.1} parent=1 // pred_fallthru
      _
    %v82 = vld [vmem:[%s0] sm:$0xf]
    %v83 = vld [vmem:[%s1] sm:$0xf]
    %v84 = vld [vmem:[%s1 + $0x4] sm:$0xf]
    %v85 = vld [vmem:[%s1 + $0x8] sm:$0x1]
    %v89 = vunpack.c.l.b16 %v83
    %v90 = vunpack.c.l.b16 %v84
    %v91 = vunpack.c.l.b16 %v85
    %v92 = vpack.c.b16 %v90, %v89
    %v93 = vpack.c.b16 %v91, %v91
    %vm95 = vcmask 146432
    %v97 = vsel %vm95, %v82, 0
    %vm99 = vcmask 1040384
    %v101 = vsel %vm99, %v93, 0
    %103 = vmatprep.subr.bf16.mxu0 0
    %104 = vmatpush1.bf16.msra.mxu0 0
    %105 = vmatprep.subr.bf16.mxu0 0
    %106 = vmatpush1.bf16.msra.mxu0 0
    %107 = vmatprep.subr.bf16.mxu0 0
    %108 = vmatpush1.bf16.msra.mxu0 0
    %109 = vmatprep.subr.bf16.mxu0 0
    %110 = vmatpush1.bf16.msra.mxu0 0
    %111 = vmatprep.subr.bf16.mxu0 0
    %112 = vmatpush1.bf16.msra.mxu0 0
    %113 = vmatprep.subr.bf16.mxu0 0
    %114 = vmatpush1.bf16.msra.mxu0 0
    %115 = vmatprep.subr.bf16.mxu0 0
    %116 = vmatpush1.bf16.msra.mxu0 %v101
    %117 = vmatprep.subr.bf16.mxu0 0
    %118 = vmatpush1.bf16.msra.mxu0 %v92
    %119 = vmatprep.subr.bf16.mxu0 0
    %120 = vmatpush2.bf16.msra.mxu0 0
    %121 = vmatprep.subr.bf16.mxu0 0
    %122 = vmatpush2.bf16.msra.mxu0 0
    %123 = vmatprep.subr.bf16.mxu0 0
    %124 = vmatpush2.bf16.msra.mxu0 0
    %125 = vmatprep.subr.bf16.mxu0 0
    %126 = vmatpush2.bf16.msra.mxu0 0
    %127 = vmatprep.subr.bf16.mxu0 0
    %128 = vmatpush2.bf16.msra.mxu0 0
    %129 = vmatprep.subr.bf16.mxu0 0
    %130 = vmatpush2.bf16.msra.mxu0 0
    %131 = vmatprep.subr.bf16.mxu0 0
    %132 = vmatpush2.bf16.msra.mxu0 0
    %133 = vmatprep.subr.bf16.mxu0 0
    %134 = vmatpush2.bf16.msra.mxu0 0
    %135 = vmatprep.mubr.bf16.mxu0 0
    %136 = vmatmul.mubr.bf16.gmra.mxu0 %v97
    %v137 = vpop.f32.mrf.mxu0
    %v138 = vadd.f32 0.0, %v137
    %v139 = vpop.f32.mrf.mxu0
    %v140 = vpop.f32.mrf.mxu0
    %v141 = vpop.f32.mrf.mxu0
    %142 = vdwg.mxu0
    %s143 = scalar_lea.vmem %s1, 12
    %v144 = vld [vmem:[%s143] sm:$0xf]
    %v145 = vld [vmem:[%s143 + $0x4] sm:$0xf]
    %v146 = vld [vmem:[%s143 + $0x8] sm:$0x1]
    %v150 = vunpack.c.l.b16 %v144
    %v151 = vunpack.c.l.b16 %v145
    %v152 = vunpack.c.l.b16 %v146
    %v153 = vpack.c.b16 %v151, %v150
    %v154 = vpack.c.b16 %v152, %v152
    %v157 = vsel %vm99, %v154, 0
    %159 = vmatprep.subr.bf16.mxu0 0
    %160 = vmatpush1.bf16.msra.mxu0 0
    %161 = vmatprep.subr.bf16.mxu0 0
    %162 = vmatpush1.bf16.msra.mxu0 0
    %163 = vmatprep.subr.bf16.mxu0 0
    %164 = vmatpush1.bf16.msra.mxu0 0
    %165 = vmatprep.subr.bf16.mxu0 0
    %166 = vmatpush1.bf16.msra.mxu0 0
    %167 = vmatprep.subr.bf16.mxu0 0
    %168 = vmatpush1.bf16.msra.mxu0 0
    %169 = vmatprep.subr.bf16.mxu0 0
    %170 = vmatpush1.bf16.msra.mxu0 0
    %171 = vmatprep.subr.bf16.mxu0 0
    %172 = vmatpush1.bf16.msra.mxu0 %v157
    %173 = vmatprep.subr.bf16.mxu0 0
    %174 = vmatpush1.bf16.msra.mxu0 %v153
    %175 = vmatprep.subr.bf16.mxu0 0
    %176 = vmatpush2.bf16.msra.mxu0 0
    %177 = vmatprep.subr.bf16.mxu0 0
    %178 = vmatpush2.bf16.msra.mxu0 0
    %179 = vmatprep.subr.bf16.mxu0 0
    %180 = vmatpush2.bf16.msra.mxu0 0
    %181 = vmatprep.subr.bf16.mxu0 0
    %182 = vmatpush2.bf16.msra.mxu0 0
    %183 = vmatprep.subr.bf16.mxu0 0
    %184 = vmatpush2.bf16.msra.mxu0 0
    %185 = vmatprep.subr.bf16.mxu0 0
    %186 = vmatpush2.bf16.msra.mxu0 0
    %187 = vmatprep.subr.bf16.mxu0 0
    %188 = vmatpush2.bf16.msra.mxu0 0
    %189 = vmatprep.subr.bf16.mxu0 0
    %190 = vmatpush2.bf16.msra.mxu0 0
    %191 = vmatprep.mubr.bf16.mxu0 0
    %192 = vmatmul.mubr.bf16.gmra.mxu0 %v97
    %v193 = vpop.f32.mrf.mxu0
    %v194 = vadd.f32 0.0, %v193
    %v195 = vpop.f32.mrf.mxu0
    %v196 = vpop.f32.mrf.mxu0
    %v197 = vpop.f32.mrf.mxu0
    %198 = vdwg.mxu0
    %s199 = scalar_lea.vmem %s1, 24
    %v200 = vld [vmem:[%s199] sm:$0xf]
    %v201 = vld [vmem:[%s199 + $0x4] sm:$0xf]
    %v202 = vld [vmem:[%s199 + $0x8] sm:$0x1]
    %v206 = vunpack.c.l.b16 %v200
    %v207 = vunpack.c.l.b16 %v201
    %v208 = vunpack.c.l.b16 %v202
    %v209 = vpack.c.b16 %v207, %v206
    %v210 = vpack.c.b16 %v208, %v208
    %v213 = vsel %vm99, %v210, 0
    %215 = vmatprep.subr.bf16.mxu0 0
    %216 = vmatpush1.bf16.msra.mxu0 0
    %217 = vmatprep.subr.bf16.mxu0 0
    %218 = vmatpush1.bf16.msra.mxu0 0
    %219 = vmatprep.subr.bf16.mxu0 0
    %220 = vmatpush1.bf16.msra.mxu0 0
    %221 = vmatprep.subr.bf16.mxu0 0
    %222 = vmatpush1.bf16.msra.mxu0 0
    %223 = vmatprep.subr.bf16.mxu0 0
    %224 = vmatpush1.bf16.msra.mxu0 0
    %225 = vmatprep.subr.bf16.mxu0 0
    %226 = vmatpush1.bf16.msra.mxu0 0
    %227 = vmatprep.subr.bf16.mxu0 0
    %228 = vmatpush1.bf16.msra.mxu0 %v213
    %229 = vmatprep.subr.bf16.mxu0 0
    %230 = vmatpush1.bf16.msra.mxu0 %v209
    %231 = vmatprep.subr.bf16.mxu0 0
    %232 = vmatpush2.bf16.msra.mxu0 0
    %233 = vmatprep.subr.bf16.mxu0 0
    %234 = vmatpush2.bf16.msra.mxu0 0
    %235 = vmatprep.subr.bf16.mxu0 0
    %236 = vmatpush2.bf16.msra.mxu0 0
    %237 = vmatprep.subr.bf16.mxu0 0
    %238 = vmatpush2.bf16.msra.mxu0 0
    %239 = vmatprep.subr.bf16.mxu0 0
    %240 = vmatpush2.bf16.msra.mxu0 0
    %241 = vmatprep.subr.bf16.mxu0 0
    %242 = vmatpush2.bf16.msra.mxu0 0
    %243 = vmatprep.subr.bf16.mxu0 0
    %244 = vmatpush2.bf16.msra.mxu0 0
    %245 = vmatprep.subr.bf16.mxu0 0
    %246 = vmatpush2.bf16.msra.mxu0 0
    %247 = vmatprep.mubr.bf16.mxu0 0
    %248 = vmatmul.mubr.bf16.gmra.mxu0 %v97
    %v249 = vpop.f32.mrf.mxu0
    %v250 = vadd.f32 0.0, %v249
    %v251 = vpop.f32.mrf.mxu0
    %v252 = vpop.f32.mrf.mxu0
    %v253 = vpop.f32.mrf.mxu0
    %254 = vdwg.mxu0
    %s255 = scalar_lea.vmem %s1, 36
    %v256 = vld [vmem:[%s255] sm:$0xf]
    %v257 = vld [vmem:[%s255 + $0x4] sm:$0xf]
    %v258 = vld [vmem:[%s255 + $0x8] sm:$0x1]
    %v262 = vunpack.c.l.b16 %v256
    %v263 = vunpack.c.l.b16 %v257
    %v264 = vunpack.c.l.b16 %v258
    %v265 = vpack.c.b16 %v263, %v262
    %v266 = vpack.c.b16 %v264, %v264
    %v269 = vsel %vm99, %v266, 0
    %271 = vmatprep.subr.bf16.mxu0 0
    %272 = vmatpush1.bf16.msra.mxu0 0
    %273 = vmatprep.subr.bf16.mxu0 0
    %274 = vmatpush1.bf16.msra.mxu0 0
    %275 = vmatprep.subr.bf16.mxu0 0
    %276 = vmatpush1.bf16.msra.mxu0 0
    %277 = vmatprep.subr.bf16.mxu0 0
    %278 = vmatpush1.bf16.msra.mxu0 0
    %279 = vmatprep.subr.bf16.mxu0 0
    %280 = vmatpush1.bf16.msra.mxu0 0
    %281 = vmatprep.subr.bf16.mxu0 0
    %282 = vmatpush1.bf16.msra.mxu0 0
    %283 = vmatprep.subr.bf16.mxu0 0
    %284 = vmatpush1.bf16.msra.mxu0 %v269
    %285 = vmatprep.subr.bf16.mxu0 0
    %286 = vmatpush1.bf16.msra.mxu0 %v265
    %287 = vmatprep.subr.bf16.mxu0 0
    %288 = vmatpush2.bf16.msra.mxu0 0
    %289 = vmatprep.subr.bf16.mxu0 0
    %290 = vmatpush2.bf16.msra.mxu0 0
    %291 = vmatprep.subr.bf16.mxu0 0
    %292 = vmatpush2.bf16.msra.mxu0 0
    %293 = vmatprep.subr.bf16.mxu0 0
    %294 = vmatpush2.bf16.msra.mxu0 0
    %295 = vmatprep.subr.bf16.mxu0 0
    %296 = vmatpush2.bf16.msra.mxu0 0
    %297 = vmatprep.subr.bf16.mxu0 0
    %298 = vmatpush2.bf16.msra.mxu0 0
    %299 = vmatprep.subr.bf16.mxu0 0
    %300 = vmatpush2.bf16.msra.mxu0 0
    %301 = vmatprep.subr.bf16.mxu0 0
    %302 = vmatpush2.bf16.msra.mxu0 0
    %303 = vmatprep.mubr.bf16.mxu0 0
    %304 = vmatmul.mubr.bf16.gmra.mxu0 %v97
    %v305 = vpop.f32.mrf.mxu0
    %v306 = vadd.f32 0.0, %v305
    %v307 = vpop.f32.mrf.mxu0
    %v308 = vpop.f32.mrf.mxu0
    %v309 = vpop.f32.mrf.mxu0
    %310 = vdwg.mxu0
    %s311 = scalar_lea.vmem %s1, 48
    %v312 = vld [vmem:[%s311] sm:$0xf]
    %v313 = vld [vmem:[%s311 + $0x4] sm:$0xf]
    %v314 = vld [vmem:[%s311 + $0x8] sm:$0x1]
    %v318 = vunpack.c.l.b16 %v312
    %v319 = vunpack.c.l.b16 %v313
    %v320 = vunpack.c.l.b16 %v314
    %v321 = vpack.c.b16 %v319, %v318
    %v322 = vpack.c.b16 %v320, %v320
    %v325 = vsel %vm99, %v322, 0
    %327 = vmatprep.subr.bf16.mxu0 0
    %328 = vmatpush1.bf16.msra.mxu0 0
    %329 = vmatprep.subr.bf16.mxu0 0
    %330 = vmatpush1.bf16.msra.mxu0 0
    %331 = vmatprep.subr.bf16.mxu0 0
    %332 = vmatpush1.bf16.msra.mxu0 0
    %333 = vmatprep.subr.bf16.mxu0 0
    %334 = vmatpush1.bf16.msra.mxu0 0
    %335 = vmatprep.subr.bf16.mxu0 0
    %336 = vmatpush1.bf16.msra.mxu0 0
    %337 = vmatprep.subr.bf16.mxu0 0
    %338 = vmatpush1.bf16.msra.mxu0 0
    %339 = vmatprep.subr.bf16.mxu0 0
    %340 = vmatpush1.bf16.msra.mxu0 %v325
    %341 = vmatprep.subr.bf16.mxu0 0
    %342 = vmatpush1.bf16.msra.mxu0 %v321
    %343 = vmatprep.subr.bf16.mxu0 0
    %344 = vmatpush2.bf16.msra.mxu0 0
    %345 = vmatprep.subr.bf16.mxu0 0
    %346 = vmatpush2.bf16.msra.mxu0 0
    %347 = vmatprep.subr.bf16.mxu0 0
    %348 = vmatpush2.bf16.msra.mxu0 0
    %349 = vmatprep.subr.bf16.mxu0 0
    %350 = vmatpush2.bf16.msra.mxu0 0
    %351 = vmatprep.subr.bf16.mxu0 0
    %352 = vmatpush2.bf16.msra.mxu0 0
    %353 = vmatprep.subr.bf16.mxu0 0
    %354 = vmatpush2.bf16.msra.mxu0 0
    %355 = vmatprep.subr.bf16.mxu0 0
    %356 = vmatpush2.bf16.msra.mxu0 0
    %357 = vmatprep.subr.bf16.mxu0 0
    %358 = vmatpush2.bf16.msra.mxu0 0
    %359 = vmatprep.mubr.bf16.mxu0 0
    %360 = vmatmul.mubr.bf16.gmra.mxu0 %v97
    %v361 = vpop.f32.mrf.mxu0
    %v362 = vadd.f32 0.0, %v361
    %v363 = vpop.f32.mrf.mxu0
    %v364 = vpop.f32.mrf.mxu0
    %v365 = vpop.f32.mrf.mxu0
    %366 = vdwg.mxu0
    %s367 = scalar_lea.vmem %s1, 60
    %v368 = vld [vmem:[%s367] sm:$0xf]
    %v369 = vld [vmem:[%s367 + $0x4] sm:$0xf]
    %v370 = vld [vmem:[%s367 + $0x8] sm:$0x1]
    %v374 = vunpack.c.l.b16 %v368
    %v375 = vunpack.c.l.b16 %v369
    %v376 = vunpack.c.l.b16 %v370
    %v377 = vpack.c.b16 %v375, %v374
    %v378 = vpack.c.b16 %v376, %v376
    %v381 = vsel %vm99, %v378, 0
    %383 = vmatprep.subr.bf16.mxu0 0
    %384 = vmatpush1.bf16.msra.mxu0 0
    %385 = vmatprep.subr.bf16.mxu0 0
    %386 = vmatpush1.bf16.msra.mxu0 0
    %387 = vmatprep.subr.bf16.mxu0 0
    %388 = vmatpush1.bf16.msra.mxu0 0
    %389 = vmatprep.subr.bf16.mxu0 0
    %390 = vmatpush1.bf16.msra.mxu0 0
    %391 = vmatprep.subr.bf16.mxu0 0
    %392 = vmatpush1.bf16.msra.mxu0 0
    %393 = vmatprep.subr.bf16.mxu0 0
    %394 = vmatpush1.bf16.msra.mxu0 0
    %395 = vmatprep.subr.bf16.mxu0 0
    %396 = vmatpush1.bf16.msra.mxu0 %v381
    %397 = vmatprep.subr.bf16.mxu0 0
    %398 = vmatpush1.bf16.msra.mxu0 %v377
    %399 = vmatprep.subr.bf16.mxu0 0
    %400 = vmatpush2.bf16.msra.mxu0 0
    %401 = vmatprep.subr.bf16.mxu0 0
    %402 = vmatpush2.bf16.msra.mxu0 0
    %403 = vmatprep.subr.bf16.mxu0 0
    %404 = vmatpush2.bf16.msra.mxu0 0
    %405 = vmatprep.subr.bf16.mxu0 0
    %406 = vmatpush2.bf16.msra.mxu0 0
    %407 = vmatprep.subr.bf16.mxu0 0
    %408 = vmatpush2.bf16.msra.mxu0 0
    %409 = vmatprep.subr.bf16.mxu0 0
    %410 = vmatpush2.bf16.msra.mxu0 0
    %411 = vmatprep.subr.bf16.mxu0 0
    %412 = vmatpush2.bf16.msra.mxu0 0
    %413 = vmatprep.subr.bf16.mxu0 0
    %414 = vmatpush2.bf16.msra.mxu0 0
    %415 = vmatprep.mubr.bf16.mxu0 0
    %416 = vmatmul.mubr.bf16.gmra.mxu0 %v97
    %v417 = vpop.f32.mrf.mxu0
    %v418 = vadd.f32 0.0, %v417
    %v419 = vpop.f32.mrf.mxu0
    %v420 = vpop.f32.mrf.mxu0
    %v421 = vpop.f32.mrf.mxu0
    %422 = vdwg.mxu0
    %s423 = scalar_lea.vmem %s1, 72
    %v424 = vld [vmem:[%s423] sm:$0xf]
    %v425 = vld [vmem:[%s423 + $0x4] sm:$0xf]
    %v426 = vld [vmem:[%s423 + $0x8] sm:$0x1]
    %v430 = vunpack.c.l.b16 %v424
    %v431 = vunpack.c.l.b16 %v425
    %v432 = vunpack.c.l.b16 %v426
    %v433 = vpack.c.b16 %v431, %v430
    %v434 = vpack.c.b16 %v432, %v432
    %v437 = vsel %vm99, %v434, 0
    %439 = vmatprep.subr.bf16.mxu0 0
    %440 = vmatpush1.bf16.msra.mxu0 0
    %441 = vmatprep.subr.bf16.mxu0 0
    %442 = vmatpush1.bf16.msra.mxu0 0
    %443 = vmatprep.subr.bf16.mxu0 0
    %444 = vmatpush1.bf16.msra.mxu0 0
    %445 = vmatprep.subr.bf16.mxu0 0
    %446 = vmatpush1.bf16.msra.mxu0 0
    %447 = vmatprep.subr.bf16.mxu0 0
    %448 = vmatpush1.bf16.msra.mxu0 0
    %449 = vmatprep.subr.bf16.mxu0 0
    %450 = vmatpush1.bf16.msra.mxu0 0
    %451 = vmatprep.subr.bf16.mxu0 0
    %452 = vmatpush1.bf16.msra.mxu0 %v437
    %453 = vmatprep.subr.bf16.mxu0 0
    %454 = vmatpush1.bf16.msra.mxu0 %v433
    %455 = vmatprep.subr.bf16.mxu0 0
    %456 = vmatpush2.bf16.msra.mxu0 0
    %457 = vmatprep.subr.bf16.mxu0 0
    %458 = vmatpush2.bf16.msra.mxu0 0
    %459 = vmatprep.subr.bf16.mxu0 0
    %460 = vmatpush2.bf16.msra.mxu0 0
    %461 = vmatprep.subr.bf16.mxu0 0
    %462 = vmatpush2.bf16.msra.mxu0 0
    %463 = vmatprep.subr.bf16.mxu0 0
    %464 = vmatpush2.bf16.msra.mxu0 0
    %465 = vmatprep.subr.bf16.mxu0 0
    %466 = vmatpush2.bf16.msra.mxu0 0
    %467 = vmatprep.subr.bf16.mxu0 0
    %468 = vmatpush2.bf16.msra.mxu0 0
    %469 = vmatprep.subr.bf16.mxu0 0
    %470 = vmatpush2.bf16.msra.mxu0 0
    %471 = vmatprep.mubr.bf16.mxu0 0
    %472 = vmatmul.mubr.bf16.gmra.mxu0 %v97
    %v473 = vpop.f32.mrf.mxu0
    %v474 = vadd.f32 0.0, %v473
    %v475 = vpop.f32.mrf.mxu0
    %v476 = vpop.f32.mrf.mxu0
    %v477 = vpop.f32.mrf.mxu0
    %478 = vdwg.mxu0
    %s479 = scalar_lea.vmem %s1, 84
    %v480 = vld [vmem:[%s479] sm:$0xf]
    %v481 = vld [vmem:[%s479 + $0x4] sm:$0xf]
    %v482 = vld [vmem:[%s479 + $0x8] sm:$0x1]
    %v486 = vunpack.c.l.b16 %v480
    %v487 = vunpack.c.l.b16 %v481
    %v488 = vunpack.c.l.b16 %v482
    %v489 = vpack.c.b16 %v487, %v486
    %v490 = vpack.c.b16 %v488, %v488
    %v493 = vsel %vm99, %v490, 0
    %495 = vmatprep.subr.bf16.mxu0 0
    %496 = vmatpush1.bf16.msra.mxu0 0
    %497 = vmatprep.subr.bf16.mxu0 0
    %498 = vmatpush1.bf16.msra.mxu0 0
    %499 = vmatprep.subr.bf16.mxu0 0
    %500 = vmatpush1.bf16.msra.mxu0 0
    %501 = vmatprep.subr.bf16.mxu0 0
    %502 = vmatpush1.bf16.msra.mxu0 0
    %503 = vmatprep.subr.bf16.mxu0 0
    %504 = vmatpush1.bf16.msra.mxu0 0
    %505 = vmatprep.subr.bf16.mxu0 0
    %506 = vmatpush1.bf16.msra.mxu0 0
    %507 = vmatprep.subr.bf16.mxu0 0
    %508 = vmatpush1.bf16.msra.mxu0 %v493
    %509 = vmatprep.subr.bf16.mxu0 0
    %510 = vmatpush1.bf16.msra.mxu0 %v489
    %511 = vmatprep.subr.bf16.mxu0 0
    %512 = vmatpush2.bf16.msra.mxu0 0
    %513 = vmatprep.subr.bf16.mxu0 0
    %514 = vmatpush2.bf16.msra.mxu0 0
    %515 = vmatprep.subr.bf16.mxu0 0
    %516 = vmatpush2.bf16.msra.mxu0 0
    %517 = vmatprep.subr.bf16.mxu0 0
    %518 = vmatpush2.bf16.msra.mxu0 0
    %519 = vmatprep.subr.bf16.mxu0 0
    %520 = vmatpush2.bf16.msra.mxu0 0
    %521 = vmatprep.subr.bf16.mxu0 0
    %522 = vmatpush2.bf16.msra.mxu0 0
    %523 = vmatprep.subr.bf16.mxu0 0
    %524 = vmatpush2.bf16.msra.mxu0 0
    %525 = vmatprep.subr.bf16.mxu0 0
    %526 = vmatpush2.bf16.msra.mxu0 0
    %527 = vmatprep.mubr.bf16.mxu0 0
    %528 = vmatmul.mubr.bf16.gmra.mxu0 %v97
    %v529 = vpop.f32.mrf.mxu0
    %v530 = vadd.f32 0.0, %v529
    %v531 = vpop.f32.mrf.mxu0
    %v532 = vpop.f32.mrf.mxu0
    %v533 = vpop.f32.mrf.mxu0
    %534 = vdwg.mxu0
    %v535 = vld [vmem:[%s7] sm:$0xff]
    %v536 = vld [vmem:[%s8] sm:$0xff]
    %v537 = vld [vmem:[%s8 + $0x8] sm:$0xff]
    %v538 = vld [vmem:[%s8 + $0x10] sm:$0xff]
    %v539 = vld [vmem:[%s8 + $0x18] sm:$0xff]
    %v540 = vld [vmem:[%s8 + $0x20] sm:$0xff]
    %v541 = vld [vmem:[%s8 + $0x28] sm:$0xff]
    %v542 = vld [vmem:[%s8 + $0x30] sm:$0xff]
    %v543 = vld [vmem:[%s8 + $0x38] sm:$0xff]
    %v544 = vld [vmem:[%s13] sm:$0xff]
    %v545 = vld [vmem:[%s14] sm:$0xff]
    %vm546 = vcmask 154624
    %v547 = vsel %vm546, %v138, 0.0
    %548 = vadd.xlane.f32.xlu0 %v547
    %v549 = vpop.xlane.xlu0 %548
    %v550 = vsel %vm546, %v194, 0.0
    %551 = vadd.xlane.f32.xlu0 %v550
    %v552 = vpop.xlane.xlu0 %551
    %v553 = vsel %vm546, %v250, 0.0
    %554 = vadd.xlane.f32.xlu0 %v553
    %v555 = vpop.xlane.xlu0 %554
    %v556 = vsel %vm546, %v306, 0.0
    %557 = vadd.xlane.f32.xlu0 %v556
    %v558 = vpop.xlane.xlu0 %557
    %v559 = vsel %vm546, %v362, 0.0
    %560 = vadd.xlane.f32.xlu0 %v559
    %v561 = vpop.xlane.xlu0 %560
    %v562 = vsel %vm546, %v418, 0.0
    %563 = vadd.xlane.f32.xlu0 %v562
    %v564 = vpop.xlane.xlu0 %563
    %v565 = vsel %vm546, %v474, 0.0
    %566 = vadd.xlane.f32.xlu0 %v565
    %v567 = vpop.xlane.xlu0 %566
    %v568 = vsel %vm546, %v530, 0.0
    %569 = vadd.xlane.f32.xlu0 %v568
    %v570 = vpop.xlane.xlu0 %569
    %vm571 = vcmask 523264
    %v573 = vsel %vm571, %v535, 0
    %575 = vmatprep.subr.mxu0 0.0
    %576 = vmatpush1.msra.mxu0 0.0
    %577 = vmatprep.subr.mxu0 0.0
    %578 = vmatpush1.msra.mxu0 0.0
    %579 = vmatprep.subr.mxu0 0.0
    %580 = vmatpush1.msra.mxu0 0.0
    %581 = vmatprep.subr.mxu0 0.0
    %582 = vmatpush1.msra.mxu0 0.0
    %583 = vmatprep.subr.mxu0 0.0
    %584 = vmatpush1.msra.mxu0 0.0
    %585 = vmatprep.subr.mxu0 0.0
    %586 = vmatpush1.msra.mxu0 0.0
    %587 = vmatprep.subr.mxu0 0.0
    %588 = vmatpush1.msra.mxu0 0.0
    %589 = vmatprep.subr.mxu0 0.0
    %590 = vmatpush1.msra.mxu0 0.0
    %591 = vmatprep.subr.mxu0 0.0
    %592 = vmatpush1.msra.mxu0 %v570
    %593 = vmatprep.subr.mxu0 0.0
    %594 = vmatpush1.msra.mxu0 %v567
    %595 = vmatprep.subr.mxu0 0.0
    %596 = vmatpush1.msra.mxu0 %v564
    %597 = vmatprep.subr.mxu0 0.0
    %598 = vmatpush1.msra.mxu0 %v561
    %599 = vmatprep.subr.mxu0 0.0
    %600 = vmatpush1.msra.mxu0 %v558
    %601 = vmatprep.subr.mxu0 0.0
    %602 = vmatpush1.msra.mxu0 %v555
    %603 = vmatprep.subr.mxu0 0.0
    %604 = vmatpush1.msra.mxu0 %v552
    %605 = vmatprep.subr.mxu0 0.0
    %606 = vmatpush1.msra.mxu0 %v549
    %607 = vmatprep.subr.mxu0 0.0
    %608 = vmatpush2.msra.mxu0 0.0
    %609 = vmatprep.subr.mxu0 0.0
    %610 = vmatpush2.msra.mxu0 0.0
    %611 = vmatprep.subr.mxu0 0.0
    %612 = vmatpush2.msra.mxu0 0.0
    %613 = vmatprep.subr.mxu0 0.0
    %614 = vmatpush2.msra.mxu0 0.0
    %615 = vmatprep.subr.mxu0 0.0
    %616 = vmatpush2.msra.mxu0 0.0
    %617 = vmatprep.subr.mxu0 0.0
    %618 = vmatpush2.msra.mxu0 0.0
    %619 = vmatprep.subr.mxu0 0.0
    %620 = vmatpush2.msra.mxu0 0.0
    %621 = vmatprep.subr.mxu0 0.0
    %622 = vmatpush2.msra.mxu0 0.0
    %623 = vmatprep.subr.mxu0 0.0
    %624 = vmatpush2.msra.mxu0 0.0
    %625 = vmatprep.subr.mxu0 0.0
    %626 = vmatpush2.msra.mxu0 0.0
    %627 = vmatprep.subr.mxu0 0.0
    %628 = vmatpush2.msra.mxu0 0.0
    %629 = vmatprep.subr.mxu0 0.0
    %630 = vmatpush2.msra.mxu0 0.0
    %631 = vmatprep.subr.mxu0 0.0
    %632 = vmatpush2.msra.mxu0 0.0
    %633 = vmatprep.subr.mxu0 0.0
    %634 = vmatpush2.msra.mxu0 0.0
    %635 = vmatprep.subr.mxu0 0.0
    %636 = vmatpush2.msra.mxu0 0.0
    %637 = vmatprep.subr.mxu0 0.0
    %638 = vmatpush2.msra.mxu0 0.0
    %639 = vmatprep.mubr.f32.mxu0 0.0
    %640 = vmatmul.mubr.f32.gmra.mxu0 %v573
    %v641 = vpop.f32.mrf.mxu0
    %v642 = vadd.f32 0.0, %v641
    %v643 = vpop.f32.mrf.mxu0
    %644 = vdwg.mxu0
    %v645 = vmul.f32 %v138, %v138
    %v646 = vmul.f32 %v194, %v194
    %v647 = vmul.f32 %v250, %v250
    %v648 = vmul.f32 %v306, %v306
    %v649 = vmul.f32 %v362, %v362
    %v650 = vmul.f32 %v418, %v418
    %v651 = vmul.f32 %v474, %v474
    %v652 = vmul.f32 %v530, %v530
    %v653 = vsel %vm546, %v645, 0.0
    %654 = vadd.xlane.f32.xlu0 %v653
    %v655 = vpop.xlane.xlu0 %654
    %v656 = vsel %vm546, %v646, 0.0
    %657 = vadd.xlane.f32.xlu0 %v656
    %v658 = vpop.xlane.xlu0 %657
    %v659 = vsel %vm546, %v647, 0.0
    %660 = vadd.xlane.f32.xlu0 %v659
    %v661 = vpop.xlane.xlu0 %660
    %v662 = vsel %vm546, %v648, 0.0
    %663 = vadd.xlane.f32.xlu0 %v662
    %v664 = vpop.xlane.xlu0 %663
    %v665 = vsel %vm546, %v649, 0.0
    %666 = vadd.xlane.f32.xlu0 %v665
    %v667 = vpop.xlane.xlu0 %666
    %v668 = vsel %vm546, %v650, 0.0
    %669 = vadd.xlane.f32.xlu0 %v668
    %v670 = vpop.xlane.xlu0 %669
    %v671 = vsel %vm546, %v651, 0.0
    %672 = vadd.xlane.f32.xlu0 %v671
    %v673 = vpop.xlane.xlu0 %672
    %v674 = vsel %vm546, %v652, 0.0
    %675 = vadd.xlane.f32.xlu0 %v674
    %v676 = vpop.xlane.xlu0 %675
    %677 = vmatprep.subr.mxu0 0.0
    %678 = vmatpush1.msra.mxu0 0.0
    %679 = vmatprep.subr.mxu0 0.0
    %680 = vmatpush1.msra.mxu0 0.0
    %681 = vmatprep.subr.mxu0 0.0
    %682 = vmatpush1.msra.mxu0 0.0
    %683 = vmatprep.subr.mxu0 0.0
    %684 = vmatpush1.msra.mxu0 0.0
    %685 = vmatprep.subr.mxu0 0.0
    %686 = vmatpush1.msra.mxu0 0.0
    %687 = vmatprep.subr.mxu0 0.0
    %688 = vmatpush1.msra.mxu0 0.0
    %689 = vmatprep.subr.mxu0 0.0
    %690 = vmatpush1.msra.mxu0 0.0
    %691 = vmatprep.subr.mxu0 0.0
    %692 = vmatpush1.msra.mxu0 0.0
    %693 = vmatprep.subr.mxu0 0.0
    %694 = vmatpush1.msra.mxu0 %v676
    %695 = vmatprep.subr.mxu0 0.0
    %696 = vmatpush1.msra.mxu0 %v673
    %697 = vmatprep.subr.mxu0 0.0
    %698 = vmatpush1.msra.mxu0 %v670
    %699 = vmatprep.subr.mxu0 0.0
    %700 = vmatpush1.msra.mxu0 %v667
    %701 = vmatprep.subr.mxu0 0.0
    %702 = vmatpush1.msra.mxu0 %v664
    %703 = vmatprep.subr.mxu0 0.0
    %704 = vmatpush1.msra.mxu0 %v661
    %705 = vmatprep.subr.mxu0 0.0
    %706 = vmatpush1.msra.mxu0 %v658
    %707 = vmatprep.subr.mxu0 0.0
    %708 = vmatpush1.msra.mxu0 %v655
    %709 = vmatprep.subr.mxu0 0.0
    %710 = vmatpush2.msra.mxu0 0.0
    %711 = vmatprep.subr.mxu0 0.0
    %712 = vmatpush2.msra.mxu0 0.0
    %713 = vmatprep.subr.mxu0 0.0
    %714 = vmatpush2.msra.mxu0 0.0
    %715 = vmatprep.subr.mxu0 0.0
    %716 = vmatpush2.msra.mxu0 0.0
    %717 = vmatprep.subr.mxu0 0.0
    %718 = vmatpush2.msra.mxu0 0.0
    %719 = vmatprep.subr.mxu0 0.0
    %720 = vmatpush2.msra.mxu0 0.0
    %721 = vmatprep.subr.mxu0 0.0
    %722 = vmatpush2.msra.mxu0 0.0
    %723 = vmatprep.subr.mxu0 0.0
    %724 = vmatpush2.msra.mxu0 0.0
    %725 = vmatprep.subr.mxu0 0.0
    %726 = vmatpush2.msra.mxu0 0.0
    %727 = vmatprep.subr.mxu0 0.0
    %728 = vmatpush2.msra.mxu0 0.0
    %729 = vmatprep.subr.mxu0 0.0
    %730 = vmatpush2.msra.mxu0 0.0
    %731 = vmatprep.subr.mxu0 0.0
    %732 = vmatpush2.msra.mxu0 0.0
    %733 = vmatprep.subr.mxu0 0.0
    %734 = vmatpush2.msra.mxu0 0.0
    %735 = vmatprep.subr.mxu0 0.0
    %736 = vmatpush2.msra.mxu0 0.0
    %737 = vmatprep.subr.mxu0 0.0
    %738 = vmatpush2.msra.mxu0 0.0
    %739 = vmatprep.subr.mxu0 0.0
    %740 = vmatpush2.msra.mxu0 0.0
    %741 = vmatprep.mubr.f32.mxu0 0.0
    %742 = vmatmul.mubr.f32.gmra.mxu0 %v573
    %v743 = vpop.f32.mrf.mxu0
    %v744 = vadd.f32 0.0, %v743
    %v745 = vpop.f32.mrf.mxu0
    %746 = vdwg.mxu0
    %v747 = vmul.f32 %v642, 0.0065789474
    %v748 = vmul.f32 %v744, 0.0065789474
    %v749 = vmul.f32 %v747, %v747
    %v750 = vsub.f32 %v748, %v749
    %v751 = vadd.f32 %v750, 0.001
    %v752 = vrsqrt.pop %v751
    %v753 = vmul.f32 %v544, %v752
    %v754 = vmul.f32 %v747, %v753
    %v755 = vsub.f32 %v545, %v754
    %vm756 = vcmask 64512
    %v758 = vsel %vm756, %v536, 0
    %v761 = vsel %vm756, %v537, 0
    %v764 = vsel %vm756, %v538, 0
    %v767 = vsel %vm756, %v539, 0
    %v770 = vsel %vm756, %v540, 0
    %v773 = vsel %vm756, %v541, 0
    %v776 = vsel %vm756, %v542, 0
    %v779 = vsel %vm756, %v543, 0
    %781 = vmatprep.subr.mxu0 0.0
    %782 = vmatpush1.msra.mxu0 0.0
    %783 = vmatprep.subr.mxu0 0.0
    %784 = vmatpush1.msra.mxu0 0.0
    %785 = vmatprep.subr.mxu0 0.0
    %786 = vmatpush1.msra.mxu0 0.0
    %787 = vmatprep.subr.mxu0 0.0
    %788 = vmatpush1.msra.mxu0 0.0
    %789 = vmatprep.subr.mxu0 0.0
    %790 = vmatpush1.msra.mxu0 0.0
    %791 = vmatprep.subr.mxu0 0.0
    %792 = vmatpush1.msra.mxu0 0.0
    %793 = vmatprep.subr.mxu0 0.0
    %794 = vmatpush1.msra.mxu0 0.0
    %795 = vmatprep.subr.mxu0 0.0
    %796 = vmatpush1.msra.mxu0 0.0
    %797 = vmatprep.subr.mxu0 0.0
    %798 = vmatpush1.msra.mxu0 0.0
    %799 = vmatprep.subr.mxu0 0.0
    %800 = vmatpush1.msra.mxu0 0.0
    %801 = vmatprep.subr.mxu0 0.0
    %802 = vmatpush1.msra.mxu0 0.0
    %803 = vmatprep.subr.mxu0 0.0
    %804 = vmatpush1.msra.mxu0 0.0
    %805 = vmatprep.subr.mxu0 0.0
    %806 = vmatpush1.msra.mxu0 0.0
    %807 = vmatprep.subr.mxu0 0.0
    %808 = vmatpush1.msra.mxu0 0.0
    %809 = vmatprep.subr.mxu0 0.0
    %810 = vmatpush1.msra.mxu0 0.0
    %811 = vmatprep.subr.mxu0 0.0
    %812 = vmatpush1.msra.mxu0 %v753
    %813 = vmatprep.subr.mxu0 0.0
    %814 = vmatpush2.msra.mxu0 0.0
    %815 = vmatprep.subr.mxu0 0.0
    %816 = vmatpush2.msra.mxu0 0.0
    %817 = vmatprep.subr.mxu0 0.0
    %818 = vmatpush2.msra.mxu0 0.0
    %819 = vmatprep.subr.mxu0 0.0
    %820 = vmatpush2.msra.mxu0 0.0
    %821 = vmatprep.subr.mxu0 0.0
    %822 = vmatpush2.msra.mxu0 0.0
    %823 = vmatprep.subr.mxu0 0.0
    %824 = vmatpush2.msra.mxu0 0.0
    %825 = vmatprep.subr.mxu0 0.0
    %826 = vmatpush2.msra.mxu0 0.0
    %827 = vmatprep.subr.mxu0 0.0
    %828 = vmatpush2.msra.mxu0 0.0
    %829 = vmatprep.subr.mxu0 0.0
    %830 = vmatpush2.msra.mxu0 0.0
    %831 = vmatprep.subr.mxu0 0.0
    %832 = vmatpush2.msra.mxu0 0.0
    %833 = vmatprep.subr.mxu0 0.0
    %834 = vmatpush2.msra.mxu0 0.0
    %835 = vmatprep.subr.mxu0 0.0
    %836 = vmatpush2.msra.mxu0 0.0
    %837 = vmatprep.subr.mxu0 0.0
    %838 = vmatpush2.msra.mxu0 0.0
    %839 = vmatprep.subr.mxu0 0.0
    %840 = vmatpush2.msra.mxu0 0.0
    %841 = vmatprep.subr.mxu0 0.0
    %842 = vmatpush2.msra.mxu0 0.0
    %843 = vmatprep.subr.mxu0 0.0
    %844 = vmatpush2.msra.mxu0 0.0
    %845 = vmatprep.mubr.f32.mxu0 0.0
    %846 = vmatmul.mubr.f32.gmra.mxu0 %v758
    %v847 = vpop.f32.mrf.mxu0
    %v848 = vadd.f32 0.0, %v847
    %v849 = vpop.f32.mrf.mxu0
    %850 = vmatprep.mubr.f32.mxu0 0.0
    %851 = vmatmul.mubr.f32.gmra.mxu0 %v761
    %v852 = vpop.f32.mrf.mxu0
    %v853 = vadd.f32 0.0, %v852
    %v854 = vpop.f32.mrf.mxu0
    %855 = vmatprep.mubr.f32.mxu0 0.0
    %856 = vmatmul.mubr.f32.gmra.mxu0 %v764
    %v857 = vpop.f32.mrf.mxu0
    %v858 = vadd.f32 0.0, %v857
    %v859 = vpop.f32.mrf.mxu0
    %860 = vmatprep.mubr.f32.mxu0 0.0
    %861 = vmatmul.mubr.f32.gmra.mxu0 %v767
    %v862 = vpop.f32.mrf.mxu0
    %v863 = vadd.f32 0.0, %v862
    %v864 = vpop.f32.mrf.mxu0
    %865 = vmatprep.mubr.f32.mxu0 0.0
    %866 = vmatmul.mubr.f32.gmra.mxu0 %v770
    %v867 = vpop.f32.mrf.mxu0
    %v868 = vadd.f32 0.0, %v867
    %v869 = vpop.f32.mrf.mxu0
    %870 = vmatprep.mubr.f32.mxu0 0.0
    %871 = vmatmul.mubr.f32.gmra.mxu0 %v773
    %v872 = vpop.f32.mrf.mxu0
    %v873 = vadd.f32 0.0, %v872
    %v874 = vpop.f32.mrf.mxu0
    %875 = vmatprep.mubr.f32.mxu0 0.0
    %876 = vmatmul.mubr.f32.gmra.mxu0 %v776
    %v877 = vpop.f32.mrf.mxu0
    %v878 = vadd.f32 0.0, %v877
    %v879 = vpop.f32.mrf.mxu0
    %880 = vmatprep.mubr.f32.mxu0 0.0
    %881 = vmatmul.mubr.f32.gmra.mxu0 %v779
    %v882 = vpop.f32.mrf.mxu0
    %v883 = vadd.f32 0.0, %v882
    %v884 = vpop.f32.mrf.mxu0
    %885 = vdwg.mxu0
    %887 = vset.pattern.permute.xlu0 0
    %888 = vperm.xlu0 %887, %v848
    %v889 = vpop.permute.xlu0 %888
    %892 = vset.pattern.permute.xlu0 0
    %893 = vperm.xlu0 %892, %v853
    %v894 = vpop.permute.xlu0 %893
    %897 = vset.pattern.permute.xlu0 0
    %898 = vperm.xlu0 %897, %v858
    %v899 = vpop.permute.xlu0 %898
    %902 = vset.pattern.permute.xlu0 0
    %903 = vperm.xlu0 %902, %v863
    %v904 = vpop.permute.xlu0 %903
    %907 = vset.pattern.permute.xlu0 0
    %908 = vperm.xlu0 %907, %v868
    %v909 = vpop.permute.xlu0 %908
    %912 = vset.pattern.permute.xlu0 0
    %913 = vperm.xlu0 %912, %v873
    %v914 = vpop.permute.xlu0 %913
    %917 = vset.pattern.permute.xlu0 0
    %918 = vperm.xlu0 %917, %v878
    %v919 = vpop.permute.xlu0 %918
    %922 = vset.pattern.permute.xlu0 0
    %923 = vperm.xlu0 %922, %v883
    %v924 = vpop.permute.xlu0 %923
    %v926 = vmul.f32 %v138, %v889
    %v927 = vmul.f32 %v194, %v894
    %v928 = vmul.f32 %v250, %v899
    %v929 = vmul.f32 %v306, %v904
    %v930 = vmul.f32 %v362, %v909
    %v931 = vmul.f32 %v418, %v914
    %v932 = vmul.f32 %v474, %v919
    %v933 = vmul.f32 %v530, %v924
    %934 = vmatprep.subr.mxu0 0.0
    %935 = vmatpush1.msra.mxu0 0.0
    %936 = vmatprep.subr.mxu0 0.0
    %937 = vmatpush1.msra.mxu0 0.0
    %938 = vmatprep.subr.mxu0 0.0
    %939 = vmatpush1.msra.mxu0 0.0
    %940 = vmatprep.subr.mxu0 0.0
    %941 = vmatpush1.msra.mxu0 0.0
    %942 = vmatprep.subr.mxu0 0.0
    %943 = vmatpush1.msra.mxu0 0.0
    %944 = vmatprep.subr.mxu0 0.0
    %945 = vmatpush1.msra.mxu0 0.0
    %946 = vmatprep.subr.mxu0 0.0
    %947 = vmatpush1.msra.mxu0 0.0
    %948 = vmatprep.subr.mxu0 0.0
    %949 = vmatpush1.msra.mxu0 0.0
    %950 = vmatprep.subr.mxu0 0.0
    %951 = vmatpush1.msra.mxu0 0.0
    %952 = vmatprep.subr.mxu0 0.0
    %953 = vmatpush1.msra.mxu0 0.0
    %954 = vmatprep.subr.mxu0 0.0
    %955 = vmatpush1.msra.mxu0 0.0
    %956 = vmatprep.subr.mxu0 0.0
    %957 = vmatpush1.msra.mxu0 0.0
    %958 = vmatprep.subr.mxu0 0.0
    %959 = vmatpush1.msra.mxu0 0.0
    %960 = vmatprep.subr.mxu0 0.0
    %961 = vmatpush1.msra.mxu0 0.0
    %962 = vmatprep.subr.mxu0 0.0
    %963 = vmatpush1.msra.mxu0 0.0
    %964 = vmatprep.subr.mxu0 0.0
    %965 = vmatpush1.msra.mxu0 %v755
    %966 = vmatprep.subr.mxu0 0.0
    %967 = vmatpush2.msra.mxu0 0.0
    %968 = vmatprep.subr.mxu0 0.0
    %969 = vmatpush2.msra.mxu0 0.0
    %970 = vmatprep.subr.mxu0 0.0
    %971 = vmatpush2.msra.mxu0 0.0
    %972 = vmatprep.subr.mxu0 0.0
    %973 = vmatpush2.msra.mxu0 0.0
    %974 = vmatprep.subr.mxu0 0.0
    %975 = vmatpush2.msra.mxu0 0.0
    %976 = vmatprep.subr.mxu0 0.0
    %977 = vmatpush2.msra.mxu0 0.0
    %978 = vmatprep.subr.mxu0 0.0
    %979 = vmatpush2.msra.mxu0 0.0
    %980 = vmatprep.subr.mxu0 0.0
    %981 = vmatpush2.msra.mxu0 0.0
    %982 = vmatprep.subr.mxu0 0.0
    %983 = vmatpush2.msra.mxu0 0.0
    %984 = vmatprep.subr.mxu0 0.0
    %985 = vmatpush2.msra.mxu0 0.0
    %986 = vmatprep.subr.mxu0 0.0
    %987 = vmatpush2.msra.mxu0 0.0
    %988 = vmatprep.subr.mxu0 0.0
    %989 = vmatpush2.msra.mxu0 0.0
    %990 = vmatprep.subr.mxu0 0.0
    %991 = vmatpush2.msra.mxu0 0.0
    %992 = vmatprep.subr.mxu0 0.0
    %993 = vmatpush2.msra.mxu0 0.0
    %994 = vmatprep.subr.mxu0 0.0
    %995 = vmatpush2.msra.mxu0 0.0
    %996 = vmatprep.subr.mxu0 0.0
    %997 = vmatpush2.msra.mxu0 0.0
    %998 = vmatprep.mubr.f32.mxu0 0.0
    %999 = vmatmul.mubr.f32.gmra.mxu0 %v758
    %v1000 = vpop.f32.mrf.mxu0
    %v1001 = vadd.f32 0.0, %v1000
    %v1002 = vpop.f32.mrf.mxu0
    %1003 = vmatprep.mubr.f32.mxu0 0.0
    %1004 = vmatmul.mubr.f32.gmra.mxu0 %v761
    %v1005 = vpop.f32.mrf.mxu0
    %v1006 = vadd.f32 0.0, %v1005
    %v1007 = vpop.f32.mrf.mxu0
    %1008 = vmatprep.mubr.f32.mxu0 0.0
    %1009 = vmatmul.mubr.f32.gmra.mxu0 %v764
    %v1010 = vpop.f32.mrf.mxu0
    %v1011 = vadd.f32 0.0, %v1010
    %v1012 = vpop.f32.mrf.mxu0
    %1013 = vmatprep.mubr.f32.mxu0 0.0
    %1014 = vmatmul.mubr.f32.gmra.mxu0 %v767
    %v1015 = vpop.f32.mrf.mxu0
    %v1016 = vadd.f32 0.0, %v1015
    %v1017 = vpop.f32.mrf.mxu0
    %1018 = vmatprep.mubr.f32.mxu0 0.0
    %1019 = vmatmul.mubr.f32.gmra.mxu0 %v770
    %v1020 = vpop.f32.mrf.mxu0
    %v1021 = vadd.f32 0.0, %v1020
    %v1022 = vpop.f32.mrf.mxu0
    %1023 = vmatprep.mubr.f32.mxu0 0.0
    %1024 = vmatmul.mubr.f32.gmra.mxu0 %v773
    %v1025 = vpop.f32.mrf.mxu0
    %v1026 = vadd.f32 0.0, %v1025
    %v1027 = vpop.f32.mrf.mxu0
    %1028 = vmatprep.mubr.f32.mxu0 0.0
    %1029 = vmatmul.mubr.f32.gmra.mxu0 %v776
    %v1030 = vpop.f32.mrf.mxu0
    %v1031 = vadd.f32 0.0, %v1030
    %v1032 = vpop.f32.mrf.mxu0
    %1033 = vmatprep.mubr.f32.mxu0 0.0
    %1034 = vmatmul.mubr.f32.gmra.mxu0 %v779
    %v1035 = vpop.f32.mrf.mxu0
    %v1036 = vadd.f32 0.0, %v1035
    %v1037 = vpop.f32.mrf.mxu0
    %1038 = vdwg.mxu0
    %1040 = vset.pattern.permute.xlu0 0
    %1041 = vperm.xlu0 %1040, %v1001
    %v1042 = vpop.permute.xlu0 %1041
    %1045 = vset.pattern.permute.xlu0 0
    %1046 = vperm.xlu0 %1045, %v1006
    %v1047 = vpop.permute.xlu0 %1046
    %1050 = vset.pattern.permute.xlu0 0
    %1051 = vperm.xlu0 %1050, %v1011
    %v1052 = vpop.permute.xlu0 %1051
    %1055 = vset.pattern.permute.xlu0 0
    %1056 = vperm.xlu0 %1055, %v1016
    %v1057 = vpop.permute.xlu0 %1056
    %1060 = vset.pattern.permute.xlu0 0
    %1061 = vperm.xlu0 %1060, %v1021
    %v1062 = vpop.permute.xlu0 %1061
    %1065 = vset.pattern.permute.xlu0 0
    %1066 = vperm.xlu0 %1065, %v1026
    %v1067 = vpop.permute.xlu0 %1066
    %1070 = vset.pattern.permute.xlu0 0
    %1071 = vperm.xlu0 %1070, %v1031
    %v1072 = vpop.permute.xlu0 %1071
    %1075 = vset.pattern.permute.xlu0 0
    %1076 = vperm.xlu0 %1075, %v1036
    %v1077 = vpop.permute.xlu0 %1076
    %v1079 = vadd.f32 %v926, %v1042
    %v1080 = vadd.f32 %v927, %v1047
    %v1081 = vadd.f32 %v928, %v1052
    %v1082 = vadd.f32 %v929, %v1057
    %v1083 = vadd.f32 %v930, %v1062
    %v1084 = vadd.f32 %v931, %v1067
    %v1085 = vadd.f32 %v932, %v1072
    %v1086 = vadd.f32 %v933, %v1077
    %v1087 = vld [vmem:[%s2] sm:$0xf]
    %v1088 = vld [vmem:[%s2 + $0x4] sm:$0xf]
    %v1089 = vld [vmem:[%s2 + $0x8] sm:$0xf]
    %v1090 = vld [vmem:[%s2 + $0xc] sm:$0xf]
    %v1091 = vpack.c.bf16 %v1080, %v1079
    %v1092 = vpack.c.bf16 %v1082, %v1081
    %v1093 = vpack.c.bf16 %v1084, %v1083
    %v1094 = vpack.c.bf16 %v1086, %v1085
    %v1099 = vunpack.c.l.b16 %v1087
    %v1100 = vunpack.c.l.b16 %v1088
    %v1101 = vunpack.c.l.b16 %v1089
    %v1102 = vunpack.c.l.b16 %v1090
    %v1103 = vpack.c.b16 %v1100, %v1099
    %v1104 = vpack.c.b16 %v1102, %v1101
    %v1106 = vsel %vm571, %v1103, 0
    %v1109 = vsel %vm571, %v1104, 0
    %1111 = vmatprep.subr.bf16.mxu0 0
    %1112 = vmatpush1.bf16.msra.mxu0 0
    %1113 = vmatprep.subr.bf16.mxu0 0
    %1114 = vmatpush1.bf16.msra.mxu0 0
    %1115 = vmatprep.subr.bf16.mxu0 0
    %1116 = vmatpush1.bf16.msra.mxu0 0
    %1117 = vmatprep.subr.bf16.mxu0 0
    %1118 = vmatpush1.bf16.msra.mxu0 0
    %1119 = vmatprep.subr.bf16.mxu0 0
    %1120 = vmatpush1.bf16.msra.mxu0 %v1094
    %1121 = vmatprep.subr.bf16.mxu0 0
    %1122 = vmatpush1.bf16.msra.mxu0 %v1093
    %1123 = vmatprep.subr.bf16.mxu0 0
    %1124 = vmatpush1.bf16.msra.mxu0 %v1092
    %1125 = vmatprep.subr.bf16.mxu0 0
    %1126 = vmatpush1.bf16.msra.mxu0 %v1091
    %1127 = vmatprep.subr.bf16.mxu0 0
    %1128 = vmatpush2.bf16.msra.mxu0 0
    %1129 = vmatprep.subr.bf16.mxu0 0
    %1130 = vmatpush2.bf16.msra.mxu0 0
    %1131 = vmatprep.subr.bf16.mxu0 0
    %1132 = vmatpush2.bf16.msra.mxu0 0
    %1133 = vmatprep.subr.bf16.mxu0 0
    %1134 = vmatpush2.bf16.msra.mxu0 0
    %1135 = vmatprep.subr.bf16.mxu0 0
    %1136 = vmatpush2.bf16.msra.mxu0 0
    %1137 = vmatprep.subr.bf16.mxu0 0
    %1138 = vmatpush2.bf16.msra.mxu0 0
    %1139 = vmatprep.subr.bf16.mxu0 0
    %1140 = vmatpush2.bf16.msra.mxu0 0
    %1141 = vmatprep.subr.bf16.mxu0 0
    %1142 = vmatpush2.bf16.msra.mxu0 0
    %1143 = vmatprep.mubr.bf16.mxu0 0
    %1144 = vmatmul.mubr.bf16.gmra.mxu0 %v1106
    %v1145 = vpop.f32.mrf.mxu0
    %v1146 = vadd.f32 0.0, %v1145
    %v1147 = vpop.f32.mrf.mxu0
    %v1148 = vpop.f32.mrf.mxu0
    %v1149 = vadd.f32 0.0, %v1148
    %v1150 = vpop.f32.mrf.mxu0
    %1151 = vmatprep.mubr.bf16.mxu0 0
    %1152 = vmatmul.mubr.bf16.gmra.mxu0 %v1109
    %v1153 = vpop.f32.mrf.mxu0
    %v1154 = vadd.f32 0.0, %v1153
    %v1155 = vpop.f32.mrf.mxu0
    %v1156 = vpop.f32.mrf.mxu0
    %v1157 = vadd.f32 0.0, %v1156
    %v1158 = vpop.f32.mrf.mxu0
    %1159 = vdwg.mxu0
    %v1160 = vld [vmem:[%s9] sm:$0xff]
    %v1161 = vld [vmem:[%s9 + $0x8] sm:$0xff]
    %v1162 = vld [vmem:[%s10] sm:$0xff]
    %v1163 = vld [vmem:[%s10 + $0x8] sm:$0xff]
    %v1164 = vld [vmem:[%s10 + $0x10] sm:$0xff]
    %v1165 = vld [vmem:[%s10 + $0x18] sm:$0xff]
    %v1166 = vld [vmem:[%s15] sm:$0xff]
    %v1167 = vld [vmem:[%s15 + $0x8] sm:$0xff]
    %v1168 = vld [vmem:[%s16] sm:$0xff]
    %v1169 = vld [vmem:[%s16 + $0x8] sm:$0xff]
    %v1170 = vsel %vm546, %v1146, 0.0
    %1171 = vadd.xlane.f32.xlu0 %v1170
    %v1172 = vpop.xlane.xlu0 %1171
    %v1173 = vsel %vm546, %v1149, 0.0
    %1174 = vadd.xlane.f32.xlu0 %v1173
    %v1175 = vpop.xlane.xlu0 %1174
    %v1176 = vsel %vm546, %v1154, 0.0
    %1177 = vadd.xlane.f32.xlu0 %v1176
    %v1178 = vpop.xlane.xlu0 %1177
    %v1179 = vsel %vm546, %v1157, 0.0
    %1180 = vadd.xlane.f32.xlu0 %v1179
    %v1181 = vpop.xlane.xlu0 %1180
    %vm1182 = vcmask 261120
    %v1184 = vsel %vm1182, %v1160, 0
    %v1187 = vsel %vm1182, %v1161, 0
    %1189 = vmatprep.subr.mxu0 0.0
    %1190 = vmatpush1.msra.mxu0 0.0
    %1191 = vmatprep.subr.mxu0 0.0
    %1192 = vmatpush1.msra.mxu0 0.0
    %1193 = vmatprep.subr.mxu0 0.0
    %1194 = vmatpush1.msra.mxu0 0.0
    %1195 = vmatprep.subr.mxu0 0.0
    %1196 = vmatpush1.msra.mxu0 0.0
    %1197 = vmatprep.subr.mxu0 0.0
    %1198 = vmatpush1.msra.mxu0 0.0
    %1199 = vmatprep.subr.mxu0 0.0
    %1200 = vmatpush1.msra.mxu0 0.0
    %1201 = vmatprep.subr.mxu0 0.0
    %1202 = vmatpush1.msra.mxu0 0.0
    %1203 = vmatprep.subr.mxu0 0.0
    %1204 = vmatpush1.msra.mxu0 0.0
    %1205 = vmatprep.subr.mxu0 0.0
    %1206 = vmatpush1.msra.mxu0 0.0
    %1207 = vmatprep.subr.mxu0 0.0
    %1208 = vmatpush1.msra.mxu0 0.0
    %1209 = vmatprep.subr.mxu0 0.0
    %1210 = vmatpush1.msra.mxu0 0.0
    %1211 = vmatprep.subr.mxu0 0.0
    %1212 = vmatpush1.msra.mxu0 0.0
    %1213 = vmatprep.subr.mxu0 0.0
    %1214 = vmatpush1.msra.mxu0 %v1181
    %1215 = vmatprep.subr.mxu0 0.0
    %1216 = vmatpush1.msra.mxu0 %v1178
    %1217 = vmatprep.subr.mxu0 0.0
    %1218 = vmatpush1.msra.mxu0 %v1175
    %1219 = vmatprep.subr.mxu0 0.0
    %1220 = vmatpush1.msra.mxu0 %v1172
    %1221 = vmatprep.subr.mxu0 0.0
    %1222 = vmatpush2.msra.mxu0 0.0
    %1223 = vmatprep.subr.mxu0 0.0
    %1224 = vmatpush2.msra.mxu0 0.0
    %1225 = vmatprep.subr.mxu0 0.0
    %1226 = vmatpush2.msra.mxu0 0.0
    %1227 = vmatprep.subr.mxu0 0.0
    %1228 = vmatpush2.msra.mxu0 0.0
    %1229 = vmatprep.subr.mxu0 0.0
    %1230 = vmatpush2.msra.mxu0 0.0
    %1231 = vmatprep.subr.mxu0 0.0
    %1232 = vmatpush2.msra.mxu0 0.0
    %1233 = vmatprep.subr.mxu0 0.0
    %1234 = vmatpush2.msra.mxu0 0.0
    %1235 = vmatprep.subr.mxu0 0.0
    %1236 = vmatpush2.msra.mxu0 0.0
    %1237 = vmatprep.subr.mxu0 0.0
    %1238 = vmatpush2.msra.mxu0 0.0
    %1239 = vmatprep.subr.mxu0 0.0
    %1240 = vmatpush2.msra.mxu0 0.0
    %1241 = vmatprep.subr.mxu0 0.0
    %1242 = vmatpush2.msra.mxu0 0.0
    %1243 = vmatprep.subr.mxu0 0.0
    %1244 = vmatpush2.msra.mxu0 0.0
    %1245 = vmatprep.subr.mxu0 0.0
    %1246 = vmatpush2.msra.mxu0 0.0
    %1247 = vmatprep.subr.mxu0 0.0
    %1248 = vmatpush2.msra.mxu0 0.0
    %1249 = vmatprep.subr.mxu0 0.0
    %1250 = vmatpush2.msra.mxu0 0.0
    %1251 = vmatprep.subr.mxu0 0.0
    %1252 = vmatpush2.msra.mxu0 0.0
    %1253 = vmatprep.mubr.f32.mxu0 0.0
    %1254 = vmatmul.mubr.f32.gmra.mxu0 %v1184
    %v1255 = vpop.f32.mrf.mxu0
    %v1256 = vadd.f32 0.0, %v1255
    %v1257 = vpop.f32.mrf.mxu0
    %1258 = vmatprep.mubr.f32.mxu0 0.0
    %1259 = vmatmul.mubr.f32.gmra.mxu0 %v1187
    %v1260 = vpop.f32.mrf.mxu0
    %v1261 = vadd.f32 0.0, %v1260
    %v1262 = vpop.f32.mrf.mxu0
    %1263 = vdwg.mxu0
    %v1264 = vmul.f32 %v1146, %v1146
    %v1265 = vmul.f32 %v1149, %v1149
    %v1266 = vmul.f32 %v1154, %v1154
    %v1267 = vmul.f32 %v1157, %v1157
    %v1268 = vsel %vm546, %v1264, 0.0
    %1269 = vadd.xlane.f32.xlu0 %v1268
    %v1270 = vpop.xlane.xlu0 %1269
    %v1271 = vsel %vm546, %v1265, 0.0
    %1272 = vadd.xlane.f32.xlu0 %v1271
    %v1273 = vpop.xlane.xlu0 %1272
    %v1274 = vsel %vm546, %v1266, 0.0
    %1275 = vadd.xlane.f32.xlu0 %v1274
    %v1276 = vpop.xlane.xlu0 %1275
    %v1277 = vsel %vm546, %v1267, 0.0
    %1278 = vadd.xlane.f32.xlu0 %v1277
    %v1279 = vpop.xlane.xlu0 %1278
    %1280 = vmatprep.subr.mxu0 0.0
    %1281 = vmatpush1.msra.mxu0 0.0
    %1282 = vmatprep.subr.mxu0 0.0
    %1283 = vmatpush1.msra.mxu0 0.0
    %1284 = vmatprep.subr.mxu0 0.0
    %1285 = vmatpush1.msra.mxu0 0.0
    %1286 = vmatprep.subr.mxu0 0.0
    %1287 = vmatpush1.msra.mxu0 0.0
    %1288 = vmatprep.subr.mxu0 0.0
    %1289 = vmatpush1.msra.mxu0 0.0
    %1290 = vmatprep.subr.mxu0 0.0
    %1291 = vmatpush1.msra.mxu0 0.0
    %1292 = vmatprep.subr.mxu0 0.0
    %1293 = vmatpush1.msra.mxu0 0.0
    %1294 = vmatprep.subr.mxu0 0.0
    %1295 = vmatpush1.msra.mxu0 0.0
    %1296 = vmatprep.subr.mxu0 0.0
    %1297 = vmatpush1.msra.mxu0 0.0
    %1298 = vmatprep.subr.mxu0 0.0
    %1299 = vmatpush1.msra.mxu0 0.0
    %1300 = vmatprep.subr.mxu0 0.0
    %1301 = vmatpush1.msra.mxu0 0.0
    %1302 = vmatprep.subr.mxu0 0.0
    %1303 = vmatpush1.msra.mxu0 0.0
    %1304 = vmatprep.subr.mxu0 0.0
    %1305 = vmatpush1.msra.mxu0 %v1279
    %1306 = vmatprep.subr.mxu0 0.0
    %1307 = vmatpush1.msra.mxu0 %v1276
    %1308 = vmatprep.subr.mxu0 0.0
    %1309 = vmatpush1.msra.mxu0 %v1273
    %1310 = vmatprep.subr.mxu0 0.0
    %1311 = vmatpush1.msra.mxu0 %v1270
    %1312 = vmatprep.subr.mxu0 0.0
    %1313 = vmatpush2.msra.mxu0 0.0
    %1314 = vmatprep.subr.mxu0 0.0
    %1315 = vmatpush2.msra.mxu0 0.0
    %1316 = vmatprep.subr.mxu0 0.0
    %1317 = vmatpush2.msra.mxu0 0.0
    %1318 = vmatprep.subr.mxu0 0.0
    %1319 = vmatpush2.msra.mxu0 0.0
    %1320 = vmatprep.subr.mxu0 0.0
    %1321 = vmatpush2.msra.mxu0 0.0
    %1322 = vmatprep.subr.mxu0 0.0
    %1323 = vmatpush2.msra.mxu0 0.0
    %1324 = vmatprep.subr.mxu0 0.0
    %1325 = vmatpush2.msra.mxu0 0.0
    %1326 = vmatprep.subr.mxu0 0.0
    %1327 = vmatpush2.msra.mxu0 0.0
    %1328 = vmatprep.subr.mxu0 0.0
    %1329 = vmatpush2.msra.mxu0 0.0
    %1330 = vmatprep.subr.mxu0 0.0
    %1331 = vmatpush2.msra.mxu0 0.0
    %1332 = vmatprep.subr.mxu0 0.0
    %1333 = vmatpush2.msra.mxu0 0.0
    %1334 = vmatprep.subr.mxu0 0.0
    %1335 = vmatpush2.msra.mxu0 0.0
    %1336 = vmatprep.subr.mxu0 0.0
    %1337 = vmatpush2.msra.mxu0 0.0
    %1338 = vmatprep.subr.mxu0 0.0
    %1339 = vmatpush2.msra.mxu0 0.0
    %1340 = vmatprep.subr.mxu0 0.0
    %1341 = vmatpush2.msra.mxu0 0.0
    %1342 = vmatprep.subr.mxu0 0.0
    %1343 = vmatpush2.msra.mxu0 0.0
    %1344 = vmatprep.mubr.f32.mxu0 0.0
    %1345 = vmatmul.mubr.f32.gmra.mxu0 %v1184
    %v1346 = vpop.f32.mrf.mxu0
    %v1347 = vadd.f32 0.0, %v1346
    %v1348 = vpop.f32.mrf.mxu0
    %1349 = vmatprep.mubr.f32.mxu0 0.0
    %1350 = vmatmul.mubr.f32.gmra.mxu0 %v1187
    %v1351 = vpop.f32.mrf.mxu0
    %v1352 = vadd.f32 0.0, %v1351
    %v1353 = vpop.f32.mrf.mxu0
    %1354 = vdwg.mxu0
    %v1355 = vmul.f32 %v1256, 0.02631579
    %v1356 = vmul.f32 %v1261, 0.02631579
    %v1357 = vmul.f32 %v1347, 0.02631579
    %v1358 = vmul.f32 %v1352, 0.02631579
    %v1359 = vmul.f32 %v1355, %v1355
    %v1360 = vmul.f32 %v1356, %v1356
    %v1361 = vsub.f32 %v1357, %v1359
    %v1362 = vsub.f32 %v1358, %v1360
    %v1363 = vadd.f32 %v1361, 1e-05
    %v1364 = vadd.f32 %v1362, 1e-05
    %v1365 = vrsqrt.pop %v1363
    %v1366 = vrsqrt.pop %v1364
    %v1367 = vmul.f32 %v1166, %v1365
    %v1368 = vmul.f32 %v1167, %v1366
    %v1369 = vmul.f32 %v1355, %v1367
    %v1370 = vmul.f32 %v1356, %v1368
    %v1371 = vsub.f32 %v1168, %v1369
    %v1372 = vsub.f32 %v1169, %v1370
    %vm1373 = vcmask 130048
    %v1375 = vsel %vm1373, %v1162, 0
    %v1378 = vsel %vm1373, %v1163, 0
    %v1381 = vsel %vm1373, %v1164, 0
    %v1384 = vsel %vm1373, %v1165, 0
    %1386 = vmatprep.subr.mxu0 0.0
    %1387 = vmatpush1.msra.mxu0 0.0
    %1388 = vmatprep.subr.mxu0 0.0
    %1389 = vmatpush1.msra.mxu0 0.0
    %1390 = vmatprep.subr.mxu0 0.0
    %1391 = vmatpush1.msra.mxu0 0.0
    %1392 = vmatprep.subr.mxu0 0.0
    %1393 = vmatpush1.msra.mxu0 0.0
    %1394 = vmatprep.subr.mxu0 0.0
    %1395 = vmatpush1.msra.mxu0 0.0
    %1396 = vmatprep.subr.mxu0 0.0
    %1397 = vmatpush1.msra.mxu0 0.0
    %1398 = vmatprep.subr.mxu0 0.0
    %1399 = vmatpush1.msra.mxu0 0.0
    %1400 = vmatprep.subr.mxu0 0.0
    %1401 = vmatpush1.msra.mxu0 0.0
    %1402 = vmatprep.subr.mxu0 0.0
    %1403 = vmatpush1.msra.mxu0 0.0
    %1404 = vmatprep.subr.mxu0 0.0
    %1405 = vmatpush1.msra.mxu0 0.0
    %1406 = vmatprep.subr.mxu0 0.0
    %1407 = vmatpush1.msra.mxu0 0.0
    %1408 = vmatprep.subr.mxu0 0.0
    %1409 = vmatpush1.msra.mxu0 0.0
    %1410 = vmatprep.subr.mxu0 0.0
    %1411 = vmatpush1.msra.mxu0 0.0
    %1412 = vmatprep.subr.mxu0 0.0
    %1413 = vmatpush1.msra.mxu0 0.0
    %1414 = vmatprep.subr.mxu0 0.0
    %1415 = vmatpush1.msra.mxu0 %v1368
    %1416 = vmatprep.subr.mxu0 0.0
    %1417 = vmatpush1.msra.mxu0 %v1367
    %1418 = vmatprep.subr.mxu0 0.0
    %1419 = vmatpush2.msra.mxu0 0.0
    %1420 = vmatprep.subr.mxu0 0.0
    %1421 = vmatpush2.msra.mxu0 0.0
    %1422 = vmatprep.subr.mxu0 0.0
    %1423 = vmatpush2.msra.mxu0 0.0
    %1424 = vmatprep.subr.mxu0 0.0
    %1425 = vmatpush2.msra.mxu0 0.0
    %1426 = vmatprep.subr.mxu0 0.0
    %1427 = vmatpush2.msra.mxu0 0.0
    %1428 = vmatprep.subr.mxu0 0.0
    %1429 = vmatpush2.msra.mxu0 0.0
    %1430 = vmatprep.subr.mxu0 0.0
    %1431 = vmatpush2.msra.mxu0 0.0
    %1432 = vmatprep.subr.mxu0 0.0
    %1433 = vmatpush2.msra.mxu0 0.0
    %1434 = vmatprep.subr.mxu0 0.0
    %1435 = vmatpush2.msra.mxu0 0.0
    %1436 = vmatprep.subr.mxu0 0.0
    %1437 = vmatpush2.msra.mxu0 0.0
    %1438 = vmatprep.subr.mxu0 0.0
    %1439 = vmatpush2.msra.mxu0 0.0
    %1440 = vmatprep.subr.mxu0 0.0
    %1441 = vmatpush2.msra.mxu0 0.0
    %1442 = vmatprep.subr.mxu0 0.0
    %1443 = vmatpush2.msra.mxu0 0.0
    %1444 = vmatprep.subr.mxu0 0.0
    %1445 = vmatpush2.msra.mxu0 0.0
    %1446 = vmatprep.subr.mxu0 0.0
    %1447 = vmatpush2.msra.mxu0 0.0
    %1448 = vmatprep.subr.mxu0 0.0
    %1449 = vmatpush2.msra.mxu0 0.0
    %1450 = vmatprep.mubr.f32.mxu0 0.0
    %1451 = vmatmul.mubr.f32.gmra.mxu0 %v1375
    %v1452 = vpop.f32.mrf.mxu0
    %v1453 = vadd.f32 0.0, %v1452
    %v1454 = vpop.f32.mrf.mxu0
    %1455 = vmatprep.mubr.f32.mxu0 0.0
    %1456 = vmatmul.mubr.f32.gmra.mxu0 %v1378
    %v1457 = vpop.f32.mrf.mxu0
    %v1458 = vadd.f32 0.0, %v1457
    %v1459 = vpop.f32.mrf.mxu0
    %1460 = vmatprep.mubr.f32.mxu0 0.0
    %1461 = vmatmul.mubr.f32.gmra.mxu0 %v1381
    %v1462 = vpop.f32.mrf.mxu0
    %v1463 = vadd.f32 0.0, %v1462
    %v1464 = vpop.f32.mrf.mxu0
    %1465 = vmatprep.mubr.f32.mxu0 0.0
    %1466 = vmatmul.mubr.f32.gmra.mxu0 %v1384
    %v1467 = vpop.f32.mrf.mxu0
    %v1468 = vadd.f32 0.0, %v1467
    %v1469 = vpop.f32.mrf.mxu0
    %1470 = vdwg.mxu0
    %1472 = vset.pattern.permute.xlu0 0
    %1473 = vperm.xlu0 %1472, %v1453
    %v1474 = vpop.permute.xlu0 %1473
    %1477 = vset.pattern.permute.xlu0 0
    %1478 = vperm.xlu0 %1477, %v1458
    %v1479 = vpop.permute.xlu0 %1478
    %1482 = vset.pattern.permute.xlu0 0
    %1483 = vperm.xlu0 %1482, %v1463
    %v1484 = vpop.permute.xlu0 %1483
    %1487 = vset.pattern.permute.xlu0 0
    %1488 = vperm.xlu0 %1487, %v1468
    %v1489 = vpop.permute.xlu0 %1488
    %v1491 = vmul.f32 %v1146, %v1474
    %v1492 = vmul.f32 %v1149, %v1479
    %v1493 = vmul.f32 %v1154, %v1484
    %v1494 = vmul.f32 %v1157, %v1489
    %1495 = vmatprep.subr.mxu0 0.0
    %1496 = vmatpush1.msra.mxu0 0.0
    %1497 = vmatprep.subr.mxu0 0.0
    %1498 = vmatpush1.msra.mxu0 0.0
    %1499 = vmatprep.subr.mxu0 0.0
    %1500 = vmatpush1.msra.mxu0 0.0
    %1501 = vmatprep.subr.mxu0 0.0
    %1502 = vmatpush1.msra.mxu0 0.0
    %1503 = vmatprep.subr.mxu0 0.0
    %1504 = vmatpush1.msra.mxu0 0.0
    %1505 = vmatprep.subr.mxu0 0.0
    %1506 = vmatpush1.msra.mxu0 0.0
    %1507 = vmatprep.subr.mxu0 0.0
    %1508 = vmatpush1.msra.mxu0 0.0
    %1509 = vmatprep.subr.mxu0 0.0
    %1510 = vmatpush1.msra.mxu0 0.0
    %1511 = vmatprep.subr.mxu0 0.0
    %1512 = vmatpush1.msra.mxu0 0.0
    %1513 = vmatprep.subr.mxu0 0.0
    %1514 = vmatpush1.msra.mxu0 0.0
    %1515 = vmatprep.subr.mxu0 0.0
    %1516 = vmatpush1.msra.mxu0 0.0
    %1517 = vmatprep.subr.mxu0 0.0
    %1518 = vmatpush1.msra.mxu0 0.0
    %1519 = vmatprep.subr.mxu0 0.0
    %1520 = vmatpush1.msra.mxu0 0.0
    %1521 = vmatprep.subr.mxu0 0.0
    %1522 = vmatpush1.msra.mxu0 0.0
    %1523 = vmatprep.subr.mxu0 0.0
    %1524 = vmatpush1.msra.mxu0 %v1372
    %1525 = vmatprep.subr.mxu0 0.0
    %1526 = vmatpush1.msra.mxu0 %v1371
    %1527 = vmatprep.subr.mxu0 0.0
    %1528 = vmatpush2.msra.mxu0 0.0
    %1529 = vmatprep.subr.mxu0 0.0
    %1530 = vmatpush2.msra.mxu0 0.0
    %1531 = vmatprep.subr.mxu0 0.0
    %1532 = vmatpush2.msra.mxu0 0.0
    %1533 = vmatprep.subr.mxu0 0.0
    %1534 = vmatpush2.msra.mxu0 0.0
    %1535 = vmatprep.subr.mxu0 0.0
    %1536 = vmatpush2.msra.mxu0 0.0
    %1537 = vmatprep.subr.mxu0 0.0
    %1538 = vmatpush2.msra.mxu0 0.0
    %1539 = vmatprep.subr.mxu0 0.0
    %1540 = vmatpush2.msra.mxu0 0.0
    %1541 = vmatprep.subr.mxu0 0.0
    %1542 = vmatpush2.msra.mxu0 0.0
    %1543 = vmatprep.subr.mxu0 0.0
    %1544 = vmatpush2.msra.mxu0 0.0
    %1545 = vmatprep.subr.mxu0 0.0
    %1546 = vmatpush2.msra.mxu0 0.0
    %1547 = vmatprep.subr.mxu0 0.0
    %1548 = vmatpush2.msra.mxu0 0.0
    %1549 = vmatprep.subr.mxu0 0.0
    %1550 = vmatpush2.msra.mxu0 0.0
    %1551 = vmatprep.subr.mxu0 0.0
    %1552 = vmatpush2.msra.mxu0 0.0
    %1553 = vmatprep.subr.mxu0 0.0
    %1554 = vmatpush2.msra.mxu0 0.0
    %1555 = vmatprep.subr.mxu0 0.0
    %1556 = vmatpush2.msra.mxu0 0.0
    %1557 = vmatprep.subr.mxu0 0.0
    %1558 = vmatpush2.msra.mxu0 0.0
    %1559 = vmatprep.mubr.f32.mxu0 0.0
    %1560 = vmatmul.mubr.f32.gmra.mxu0 %v1375
    %v1561 = vpop.f32.mrf.mxu0
    %v1562 = vadd.f32 0.0, %v1561
    %v1563 = vpop.f32.mrf.mxu0
    %1564 = vmatprep.mubr.f32.mxu0 0.0
    %1565 = vmatmul.mubr.f32.gmra.mxu0 %v1378
    %v1566 = vpop.f32.mrf.mxu0
    %v1567 = vadd.f32 0.0, %v1566
    %v1568 = vpop.f32.mrf.mxu0
    %1569 = vmatprep.mubr.f32.mxu0 0.0
    %1570 = vmatmul.mubr.f32.gmra.mxu0 %v1381
    %v1571 = vpop.f32.mrf.mxu0
    %v1572 = vadd.f32 0.0, %v1571
    %v1573 = vpop.f32.mrf.mxu0
    %1574 = vmatprep.mubr.f32.mxu0 0.0
    %1575 = vmatmul.mubr.f32.gmra.mxu0 %v1384
    %v1576 = vpop.f32.mrf.mxu0
    %v1577 = vadd.f32 0.0, %v1576
    %v1578 = vpop.f32.mrf.mxu0
    %1579 = vdwg.mxu0
    %1581 = vset.pattern.permute.xlu0 0
    %1582 = vperm.xlu0 %1581, %v1562
    %v1583 = vpop.permute.xlu0 %1582
    %1586 = vset.pattern.permute.xlu0 0
    %1587 = vperm.xlu0 %1586, %v1567
    %v1588 = vpop.permute.xlu0 %1587
    %1591 = vset.pattern.permute.xlu0 0
    %1592 = vperm.xlu0 %1591, %v1572
    %v1593 = vpop.permute.xlu0 %1592
    %1596 = vset.pattern.permute.xlu0 0
    %1597 = vperm.xlu0 %1596, %v1577
    %v1598 = vpop.permute.xlu0 %1597
    %v1600 = vadd.f32 %v1491, %v1583
    %v1601 = vadd.f32 %v1492, %v1588
    %v1602 = vadd.f32 %v1493, %v1593
    %v1603 = vadd.f32 %v1494, %v1598
    %vm1604 = vcmp.gt.f32.partialorder %v1600, 0.0
    %vm1605 = vcmp.gt.f32.partialorder %v1601, 0.0
    %vm1606 = vcmp.gt.f32.partialorder %v1602, 0.0
    %vm1607 = vcmp.gt.f32.partialorder %v1603, 0.0
    %v1608 = vmin.f32 %v1600, 0.0
    %v1609 = vmin.f32 %v1601, 0.0
    %v1610 = vmin.f32 %v1602, 0.0
    %v1611 = vmin.f32 %v1603, 0.0
    %v1612 = vmul.f32 %v1608, 1.442695
    %v1613 = vpow.pop %v1612
    %v1614 = vmul.f32 %v1609, 1.442695
    %v1615 = vpow.pop %v1614
    %v1616 = vmul.f32 %v1610, 1.442695
    %v1617 = vpow.pop %v1616
    %v1618 = vmul.f32 %v1611, 1.442695
    %v1619 = vpow.pop %v1618
    %v1620 = vsub.f32 %v1613, 1.0
    %v1621 = vsub.f32 %v1615, 1.0
    %v1622 = vsub.f32 %v1617, 1.0
    %v1623 = vsub.f32 %v1619, 1.0
    %v1624 = vsel %vm1604, %v1600, %v1620
    %v1625 = vsel %vm1605, %v1601, %v1621
    %v1626 = vsel %vm1606, %v1602, %v1622
    %v1627 = vsel %vm1607, %v1603, %v1623
    %v1628 = vpack.c.bf16 %v1625, %v1624
    %v1629 = vpack.c.bf16 %v1627, %v1626
    %v1630 = vld [vmem:[%s3] sm:$0xf]
    %v1631 = vld [vmem:[%s3 + $0x4] sm:$0xf]
    %v1632 = vld [vmem:[%s3 + $0x8] sm:$0x3]
    %v1636 = vunpack.c.l.b16 %v1630
    %v1637 = vunpack.c.l.b16 %v1631
    %v1638 = vunpack.c.l.b16 %v1632
    %v1639 = vpack.c.b16 %v1637, %v1636
    %v1640 = vpack.c.b16 %v1638, %v1638
    %v1643 = vsel %vm546, %v1628, 0
    %v1646 = vsel %vm546, %v1629, 0
    %vm1648 = vcmask 1041408
    %v1649 = vsel %vm99, 4294967295, 65535
    %v1650 = vsel %vm1648, %v1649, 0
    %v1652 = vand.u32 %v1640, %v1650
    %1654 = vmatprep.subr.bf16.mxu0 0
    %1655 = vmatpush1.bf16.msra.mxu0 0
    %1656 = vmatprep.subr.bf16.mxu0 0
    %1657 = vmatpush1.bf16.msra.mxu0 0
    %1658 = vmatprep.subr.bf16.mxu0 0
    %1659 = vmatpush1.bf16.msra.mxu0 0
    %1660 = vmatprep.subr.bf16.mxu0 0
    %1661 = vmatpush1.bf16.msra.mxu0 0
    %1662 = vmatprep.subr.bf16.mxu0 0
    %1663 = vmatpush1.bf16.msra.mxu0 0
    %1664 = vmatprep.subr.bf16.mxu0 0
    %1665 = vmatpush1.bf16.msra.mxu0 0
    %1666 = vmatprep.subr.bf16.mxu0 0
    %1667 = vmatpush1.bf16.msra.mxu0 %v1652
    %1668 = vmatprep.subr.bf16.mxu0 0
    %1669 = vmatpush1.bf16.msra.mxu0 %v1639
    %1670 = vmatprep.subr.bf16.mxu0 0
    %1671 = vmatpush2.bf16.msra.mxu0 0
    %1672 = vmatprep.subr.bf16.mxu0 0
    %1673 = vmatpush2.bf16.msra.mxu0 0
    %1674 = vmatprep.subr.bf16.mxu0 0
    %1675 = vmatpush2.bf16.msra.mxu0 0
    %1676 = vmatprep.subr.bf16.mxu0 0
    %1677 = vmatpush2.bf16.msra.mxu0 0
    %1678 = vmatprep.subr.bf16.mxu0 0
    %1679 = vmatpush2.bf16.msra.mxu0 0
    %1680 = vmatprep.subr.bf16.mxu0 0
    %1681 = vmatpush2.bf16.msra.mxu0 0
    %1682 = vmatprep.subr.bf16.mxu0 0
    %1683 = vmatpush2.bf16.msra.mxu0 0
    %1684 = vmatprep.subr.bf16.mxu0 0
    %1685 = vmatpush2.bf16.msra.mxu0 0
    %1686 = vmatprep.mubr.bf16.mxu0 0
    %1687 = vmatmul.mubr.bf16.gmra.mxu0 %v1643
    %v1688 = vpop.f32.mrf.mxu0
    %v1689 = vadd.f32 0.0, %v1688
    %v1690 = vpop.f32.mrf.mxu0
    %v1691 = vpop.f32.mrf.mxu0
    %v1692 = vadd.f32 0.0, %v1691
    %v1693 = vpop.f32.mrf.mxu0
    %1694 = vmatprep.mubr.bf16.mxu0 0
    %1695 = vmatmul.mubr.bf16.gmra.mxu0 %v1646
    %v1696 = vpop.f32.mrf.mxu0
    %v1697 = vadd.f32 0.0, %v1696
    %v1698 = vpop.f32.mrf.mxu0
    %v1699 = vpop.f32.mrf.mxu0
    %v1700 = vadd.f32 0.0, %v1699
    %v1701 = vpop.f32.mrf.mxu0
    %1702 = vdwg.mxu0
    %v1703 = vld [vmem:[%s5] sm:$0x3]
    %v1704 = vld [vmem:[%s4] sm:$0xff]
    %v1705 = vld [vmem:[%s4 + $0x8] sm:$0xff]
    %v1706 = vld [vmem:[%s4 + $0x10] sm:$0xff]
    %v1707 = vld [vmem:[%s4 + $0x18] sm:$0xff]
    %v1708 = vmul.f32 %v1689, %v1704
    %v1709 = vmul.f32 %v1692, %v1705
    %v1710 = vmul.f32 %v1697, %v1706
    %v1711 = vmul.f32 %v1700, %v1707
    %v1713 = vsel %vm1182, %v1703, 0
    %1715 = vmatprep.subr.mxu0 0.0
    %1716 = vmatpush1.msra.mxu0 0.0
    %1717 = vmatprep.subr.mxu0 0.0
    %1718 = vmatpush1.msra.mxu0 0.0
    %1719 = vmatprep.subr.mxu0 0.0
    %1720 = vmatpush1.msra.mxu0 0.0
    %1721 = vmatprep.subr.mxu0 0.0
    %1722 = vmatpush1.msra.mxu0 0.0
    %1723 = vmatprep.subr.mxu0 0.0
    %1724 = vmatpush1.msra.mxu0 0.0
    %1725 = vmatprep.subr.mxu0 0.0
    %1726 = vmatpush1.msra.mxu0 0.0
    %1727 = vmatprep.subr.mxu0 0.0
    %1728 = vmatpush1.msra.mxu0 0.0
    %1729 = vmatprep.subr.mxu0 0.0
    %1730 = vmatpush1.msra.mxu0 0.0
    %1731 = vmatprep.subr.mxu0 0.0
    %1732 = vmatpush1.msra.mxu0 0.0
    %1733 = vmatprep.subr.mxu0 0.0
    %1734 = vmatpush1.msra.mxu0 0.0
    %1735 = vmatprep.subr.mxu0 0.0
    %1736 = vmatpush1.msra.mxu0 0.0
    %1737 = vmatprep.subr.mxu0 0.0
    %1738 = vmatpush1.msra.mxu0 0.0
    %1739 = vmatprep.subr.mxu0 0.0
    %1740 = vmatpush1.msra.mxu0 %v1711
    %1741 = vmatprep.subr.mxu0 0.0
    %1742 = vmatpush1.msra.mxu0 %v1710
    %1743 = vmatprep.subr.mxu0 0.0
    %1744 = vmatpush1.msra.mxu0 %v1709
    %1745 = vmatprep.subr.mxu0 0.0
    %1746 = vmatpush1.msra.mxu0 %v1708
    %1747 = vmatprep.subr.mxu0 0.0
    %1748 = vmatpush2.msra.mxu0 0.0
    %1749 = vmatprep.subr.mxu0 0.0
    %1750 = vmatpush2.msra.mxu0 0.0
    %1751 = vmatprep.subr.mxu0 0.0
    %1752 = vmatpush2.msra.mxu0 0.0
    %1753 = vmatprep.subr.mxu0 0.0
    %1754 = vmatpush2.msra.mxu0 0.0
    %1755 = vmatprep.subr.mxu0 0.0
    %1756 = vmatpush2.msra.mxu0 0.0
    %1757 = vmatprep.subr.mxu0 0.0
    %1758 = vmatpush2.msra.mxu0 0.0
    %1759 = vmatprep.subr.mxu0 0.0
    %1760 = vmatpush2.msra.mxu0 0.0
    %1761 = vmatprep.subr.mxu0 0.0
    %1762 = vmatpush2.msra.mxu0 0.0
    %1763 = vmatprep.subr.mxu0 0.0
    %1764 = vmatpush2.msra.mxu0 0.0
    %1765 = vmatprep.subr.mxu0 0.0
    %1766 = vmatpush2.msra.mxu0 0.0
    %1767 = vmatprep.subr.mxu0 0.0
    %1768 = vmatpush2.msra.mxu0 0.0
    %1769 = vmatprep.subr.mxu0 0.0
    %1770 = vmatpush2.msra.mxu0 0.0
    %1771 = vmatprep.subr.mxu0 0.0
    %1772 = vmatpush2.msra.mxu0 0.0
    %1773 = vmatprep.subr.mxu0 0.0
    %1774 = vmatpush2.msra.mxu0 0.0
    %1775 = vmatprep.subr.mxu0 0.0
    %1776 = vmatpush2.msra.mxu0 0.0
    %1777 = vmatprep.subr.mxu0 0.0
    %1778 = vmatpush2.msra.mxu0 0.0
    %1779 = vmatprep.mubr.f32.mxu0 0.0
    %1780 = vmatmul.mubr.f32.gmra.mxu0 %v1713
    %v1781 = vpop.f32.mrf.mxu0
    %v1782 = vadd.f32 0.0, %v1781
    %v1783 = vpop.f32.mrf.mxu0
    %1784 = vdwg.mxu0
    %v1785 = vpack.c.bf16 %v1782, %v1782
    %v1786 = vld [vmem:[%s6] sm:$0xff]
    %v1787 = vld [vmem:[%s6 + $0x8] sm:$0xff]
    %v1788 = vld [vmem:[%s6 + $0x10] sm:$0xff]
    %v1789 = vld [vmem:[%s6 + $0x18] sm:$0xff]
    %v1790 = vld [vmem:[%s6 + $0x20] sm:$0xff]
    %v1791 = vld [vmem:[%s6 + $0x28] sm:$0xff]
    %v1792 = vld [vmem:[%s6 + $0x30] sm:$0xff]
    %v1793 = vld [vmem:[%s6 + $0x38] sm:$0xff]
    %v1802 = vunpack.c.l.b16 %v1786
    %v1803 = vunpack.c.h.b16 %v1786
    %v1804 = vunpack.c.l.b16 %v1787
    %v1805 = vunpack.c.h.b16 %v1787
    %v1806 = vunpack.c.l.b16 %v1788
    %v1807 = vunpack.c.h.b16 %v1788
    %v1808 = vunpack.c.l.b16 %v1789
    %v1809 = vunpack.c.h.b16 %v1789
    %v1810 = vunpack.c.l.b16 %v1790
    %v1811 = vunpack.c.h.b16 %v1790
    %v1812 = vunpack.c.l.b16 %v1791
    %v1813 = vunpack.c.h.b16 %v1791
    %v1814 = vunpack.c.l.b16 %v1792
    %v1815 = vunpack.c.h.b16 %v1792
    %v1816 = vunpack.c.l.b16 %v1793
    %v1817 = vunpack.c.h.b16 %v1793
    %v1818 = vpack.c.b16 %v1804, %v1802
    %v1819 = vpack.c.b16 %v1805, %v1803
    %v1820 = vpack.c.b16 %v1808, %v1806
    %v1821 = vpack.c.b16 %v1809, %v1807
    %v1822 = vpack.c.b16 %v1812, %v1810
    %v1823 = vpack.c.b16 %v1813, %v1811
    %v1824 = vpack.c.b16 %v1816, %v1814
    %v1825 = vpack.c.b16 %v1817, %v1815
    %v1835 = vsel %vm571, %v1785, 0
    %1837 = vmatprep.subr.bf16.mxu0 0
    %1838 = vmatpush1.bf16.msra.mxu0 0
    %1839 = vmatprep.subr.bf16.mxu0 0
    %1840 = vmatpush1.bf16.msra.mxu0 0
    %1841 = vmatprep.subr.bf16.mxu0 0
    %1842 = vmatpush1.bf16.msra.mxu0 0
    %1843 = vmatprep.subr.bf16.mxu0 0
    %1844 = vmatpush1.bf16.msra.mxu0 0
    %1845 = vmatprep.subr.bf16.mxu0 %v1825
    %1846 = vmatpush1.bf16.msra.mxu0 %v1824
    %1847 = vmatprep.subr.bf16.mxu0 %v1823
    %1848 = vmatpush1.bf16.msra.mxu0 %v1822
    %1849 = vmatprep.subr.bf16.mxu0 %v1821
    %1850 = vmatpush1.bf16.msra.mxu0 %v1820
    %1851 = vmatprep.subr.bf16.mxu0 %v1819
    %1852 = vmatpush1.bf16.msra.mxu0 %v1818
    %1853 = vmatprep.subr.bf16.mxu0 0
    %1854 = vmatpush2.bf16.msra.mxu0 0
    %1855 = vmatprep.subr.bf16.mxu0 0
    %1856 = vmatpush2.bf16.msra.mxu0 0
    %1857 = vmatprep.subr.bf16.mxu0 0
    %1858 = vmatpush2.bf16.msra.mxu0 0
    %1859 = vmatprep.subr.bf16.mxu0 0
    %1860 = vmatpush2.bf16.msra.mxu0 0
    %1861 = vmatprep.subr.bf16.mxu0 0
    %1862 = vmatpush2.bf16.msra.mxu0 0
    %1863 = vmatprep.subr.bf16.mxu0 0
    %1864 = vmatpush2.bf16.msra.mxu0 0
    %1865 = vmatprep.subr.bf16.mxu0 0
    %1866 = vmatpush2.bf16.msra.mxu0 0
    %1867 = vmatprep.subr.bf16.mxu0 0
    %1868 = vmatpush2.bf16.msra.mxu0 0
    %1869 = vmatprep.mubr.bf16.mxu0 0
    %1870 = vmatmul.mubr.bf16.gmra.mxu0 %v1835
    %v1871 = vpop.f32.mrf.mxu0
    %v1872 = vadd.f32 0.0, %v1871
    %v1873 = vpop.f32.mrf.mxu0
    %v1874 = vadd.f32 0.0, %v1873
    %v1875 = vpop.f32.mrf.mxu0
    %v1876 = vpop.f32.mrf.mxu0
    %1877 = vdwg.mxu0
    %v1878 = vld [vmem:[%s11] sm:$0xff]
    %v1879 = vld [vmem:[%s11 + $0x8] sm:$0xff]
    %v1880 = vld [vmem:[%s11 + $0x10] sm:$0xff]
    %v1881 = vld [vmem:[%s11 + $0x18] sm:$0xff]
    %v1882 = vld [vmem:[%s11 + $0x20] sm:$0xff]
    %v1883 = vld [vmem:[%s11 + $0x28] sm:$0xff]
    %v1884 = vld [vmem:[%s11 + $0x30] sm:$0xff]
    %v1885 = vld [vmem:[%s11 + $0x38] sm:$0xff]
    %v1886 = vld [vmem:[%s12] sm:$0xff]
    %v1887 = vld [vmem:[%s12 + $0x8] sm:$0xff]
    %v1888 = vld [vmem:[%s12 + $0x10] sm:$0xff]
    %v1889 = vld [vmem:[%s12 + $0x18] sm:$0xff]
    %v1890 = vld [vmem:[%s12 + $0x20] sm:$0xff]
    %v1891 = vld [vmem:[%s12 + $0x28] sm:$0xff]
    %v1892 = vld [vmem:[%s12 + $0x30] sm:$0xff]
    %v1893 = vld [vmem:[%s12 + $0x38] sm:$0xff]
    %v1894 = vld [vmem:[%s12 + $0x40] sm:$0xff]
    %v1895 = vld [vmem:[%s12 + $0x48] sm:$0xff]
    %v1896 = vld [vmem:[%s12 + $0x50] sm:$0xff]
    %v1897 = vld [vmem:[%s12 + $0x58] sm:$0xff]
    %v1898 = vld [vmem:[%s12 + $0x60] sm:$0xff]
    %v1899 = vld [vmem:[%s12 + $0x68] sm:$0xff]
    %v1900 = vld [vmem:[%s12 + $0x70] sm:$0xff]
    %v1901 = vld [vmem:[%s12 + $0x78] sm:$0xff]
    %v1902 = vld [vmem:[%s12 + $0x80] sm:$0xff]
    %v1903 = vld [vmem:[%s12 + $0x88] sm:$0xff]
    %v1904 = vld [vmem:[%s12 + $0x90] sm:$0xff]
    %v1905 = vld [vmem:[%s12 + $0x98] sm:$0xff]
    %v1906 = vld [vmem:[%s17] sm:$0x1]
    %v1907 = vld [vmem:[%s18] sm:$0x1]
    %v1908 = vsel %vm1648, %v1872, 0.0
    %v1909 = vrot.slane %v1908, 4
    %v1910 = vadd.f32 %v1908, %v1909
    %v1911 = vrot.slane %v1910, 2
    %v1912 = vadd.f32 %v1910, %v1911
    %v1913 = vrot.slane %v1912, 1
    %v1914 = vadd.f32 %v1912, %v1913
    %vm1915 = vcmask 254976
    %v1916 = vsel %vm1915, %v1874, 0.0
    %v1917 = vrot.slane %v1916, 4
    %v1918 = vadd.f32 %v1916, %v1917
    %v1919 = vrot.slane %v1918, 2
    %v1920 = vadd.f32 %v1918, %v1919
    %v1921 = vrot.slane %v1920, 1
    %v1922 = vadd.f32 %v1920, %v1921
    %v1924 = vsel %vm1182, %v1922, 0
    %1926 = vmatprep.subr.mxu0 0.0
    %1927 = vmatpush1.msra.mxu0 %v1901
    %1928 = vmatprep.subr.mxu0 0.0
    %1929 = vmatpush1.msra.mxu0 %v1900
    %1930 = vmatprep.subr.mxu0 0.0
    %1931 = vmatpush1.msra.mxu0 %v1899
    %1932 = vmatprep.subr.mxu0 0.0
    %1933 = vmatpush1.msra.mxu0 %v1898
    %1934 = vmatprep.subr.mxu0 0.0
    %1935 = vmatpush1.msra.mxu0 %v1897
    %1936 = vmatprep.subr.mxu0 0.0
    %1937 = vmatpush1.msra.mxu0 %v1896
    %1938 = vmatprep.subr.mxu0 0.0
    %1939 = vmatpush1.msra.mxu0 %v1895
    %1940 = vmatprep.subr.mxu0 0.0
    %1941 = vmatpush1.msra.mxu0 %v1894
    %1942 = vmatprep.subr.mxu0 0.0
    %1943 = vmatpush1.msra.mxu0 %v1893
    %1944 = vmatprep.subr.mxu0 0.0
    %1945 = vmatpush1.msra.mxu0 %v1892
    %1946 = vmatprep.subr.mxu0 0.0
    %1947 = vmatpush1.msra.mxu0 %v1891
    %1948 = vmatprep.subr.mxu0 0.0
    %1949 = vmatpush1.msra.mxu0 %v1890
    %1950 = vmatprep.subr.mxu0 0.0
    %1951 = vmatpush1.msra.mxu0 %v1889
    %1952 = vmatprep.subr.mxu0 0.0
    %1953 = vmatpush1.msra.mxu0 %v1888
    %1954 = vmatprep.subr.mxu0 0.0
    %1955 = vmatpush1.msra.mxu0 %v1887
    %1956 = vmatprep.subr.mxu0 0.0
    %1957 = vmatpush1.msra.mxu0 %v1886
    %1958 = vmatprep.subr.mxu0 0.0
    %1959 = vmatpush2.msra.mxu0 0.0
    %1960 = vmatprep.subr.mxu0 0.0
    %1961 = vmatpush2.msra.mxu0 0.0
    %1962 = vmatprep.subr.mxu0 0.0
    %1963 = vmatpush2.msra.mxu0 0.0
    %1964 = vmatprep.subr.mxu0 0.0
    %1965 = vmatpush2.msra.mxu0 0.0
    %1966 = vmatprep.subr.mxu0 0.0
    %1967 = vmatpush2.msra.mxu0 0.0
    %1968 = vmatprep.subr.mxu0 0.0
    %1969 = vmatpush2.msra.mxu0 0.0
    %1970 = vmatprep.subr.mxu0 0.0
    %1971 = vmatpush2.msra.mxu0 0.0
    %1972 = vmatprep.subr.mxu0 0.0
    %1973 = vmatpush2.msra.mxu0 0.0
    %1974 = vmatprep.subr.mxu0 0.0
    %1975 = vmatpush2.msra.mxu0 0.0
    %1976 = vmatprep.subr.mxu0 0.0
    %1977 = vmatpush2.msra.mxu0 0.0
    %1978 = vmatprep.subr.mxu0 0.0
    %1979 = vmatpush2.msra.mxu0 0.0
    %1980 = vmatprep.subr.mxu0 0.0
    %1981 = vmatpush2.msra.mxu0 0.0
    %1982 = vmatprep.subr.mxu0 0.0
    %1983 = vmatpush2.msra.mxu0 %v1905
    %1984 = vmatprep.subr.mxu0 0.0
    %1985 = vmatpush2.msra.mxu0 %v1904
    %1986 = vmatprep.subr.mxu0 0.0
    %1987 = vmatpush2.msra.mxu0 %v1903
    %1988 = vmatprep.subr.mxu0 0.0
    %1989 = vmatpush2.msra.mxu0 %v1902
    %1990 = vmatprep.mubr.f32.mxu0 %v1924
    %1991 = vmatmul.mubr.f32.gmra.mxu0 %v1914
    %v1992 = vpop.f32.mrf.mxu0
    %v1993 = vadd.f32 0.0, %v1992
    %v1994 = vpop.f32.mrf.mxu0
    %1995 = vdwg.mxu0
    %v1996 = vmul.f32 %v1872, %v1872
    %v1997 = vmul.f32 %v1874, %v1874
    %v1998 = vsel %vm1648, %v1996, 0.0
    %v1999 = vrot.slane %v1998, 4
    %v2000 = vadd.f32 %v1998, %v1999
    %v2001 = vrot.slane %v2000, 2
    %v2002 = vadd.f32 %v2000, %v2001
    %v2003 = vrot.slane %v2002, 1
    %v2004 = vadd.f32 %v2002, %v2003
    %v2005 = vsel %vm1915, %v1997, 0.0
    %v2006 = vrot.slane %v2005, 4
    %v2007 = vadd.f32 %v2005, %v2006
    %v2008 = vrot.slane %v2007, 2
    %v2009 = vadd.f32 %v2007, %v2008
    %v2010 = vrot.slane %v2009, 1
    %v2011 = vadd.f32 %v2009, %v2010
    %v2013 = vsel %vm1182, %v2011, 0
    %2015 = vmatprep.subr.mxu0 0.0
    %2016 = vmatpush1.msra.mxu0 %v1901
    %2017 = vmatprep.subr.mxu0 0.0
    %2018 = vmatpush1.msra.mxu0 %v1900
    %2019 = vmatprep.subr.mxu0 0.0
    %2020 = vmatpush1.msra.mxu0 %v1899
    %2021 = vmatprep.subr.mxu0 0.0
    %2022 = vmatpush1.msra.mxu0 %v1898
    %2023 = vmatprep.subr.mxu0 0.0
    %2024 = vmatpush1.msra.mxu0 %v1897
    %2025 = vmatprep.subr.mxu0 0.0
    %2026 = vmatpush1.msra.mxu0 %v1896
    %2027 = vmatprep.subr.mxu0 0.0
    %2028 = vmatpush1.msra.mxu0 %v1895
    %2029 = vmatprep.subr.mxu0 0.0
    %2030 = vmatpush1.msra.mxu0 %v1894
    %2031 = vmatprep.subr.mxu0 0.0
    %2032 = vmatpush1.msra.mxu0 %v1893
    %2033 = vmatprep.subr.mxu0 0.0
    %2034 = vmatpush1.msra.mxu0 %v1892
    %2035 = vmatprep.subr.mxu0 0.0
    %2036 = vmatpush1.msra.mxu0 %v1891
    %2037 = vmatprep.subr.mxu0 0.0
    %2038 = vmatpush1.msra.mxu0 %v1890
    %2039 = vmatprep.subr.mxu0 0.0
    %2040 = vmatpush1.msra.mxu0 %v1889
    %2041 = vmatprep.subr.mxu0 0.0
    %2042 = vmatpush1.msra.mxu0 %v1888
    %2043 = vmatprep.subr.mxu0 0.0
    %2044 = vmatpush1.msra.mxu0 %v1887
    %2045 = vmatprep.subr.mxu0 0.0
    %2046 = vmatpush1.msra.mxu0 %v1886
    %2047 = vmatprep.subr.mxu0 0.0
    %2048 = vmatpush2.msra.mxu0 0.0
    %2049 = vmatprep.subr.mxu0 0.0
    %2050 = vmatpush2.msra.mxu0 0.0
    %2051 = vmatprep.subr.mxu0 0.0
    %2052 = vmatpush2.msra.mxu0 0.0
    %2053 = vmatprep.subr.mxu0 0.0
    %2054 = vmatpush2.msra.mxu0 0.0
    %2055 = vmatprep.subr.mxu0 0.0
    %2056 = vmatpush2.msra.mxu0 0.0
    %2057 = vmatprep.subr.mxu0 0.0
    %2058 = vmatpush2.msra.mxu0 0.0
    %2059 = vmatprep.subr.mxu0 0.0
    %2060 = vmatpush2.msra.mxu0 0.0
    %2061 = vmatprep.subr.mxu0 0.0
    %2062 = vmatpush2.msra.mxu0 0.0
    %2063 = vmatprep.subr.mxu0 0.0
    %2064 = vmatpush2.msra.mxu0 0.0
    %2065 = vmatprep.subr.mxu0 0.0
    %2066 = vmatpush2.msra.mxu0 0.0
    %2067 = vmatprep.subr.mxu0 0.0
    %2068 = vmatpush2.msra.mxu0 0.0
    %2069 = vmatprep.subr.mxu0 0.0
    %2070 = vmatpush2.msra.mxu0 0.0
    %2071 = vmatprep.subr.mxu0 0.0
    %2072 = vmatpush2.msra.mxu0 %v1905
    %2073 = vmatprep.subr.mxu0 0.0
    %2074 = vmatpush2.msra.mxu0 %v1904
    %2075 = vmatprep.subr.mxu0 0.0
    %2076 = vmatpush2.msra.mxu0 %v1903
    %2077 = vmatprep.subr.mxu0 0.0
    %2078 = vmatpush2.msra.mxu0 %v1902
    %2079 = vmatprep.mubr.f32.mxu0 %v2013
    %2080 = vmatmul.mubr.f32.gmra.mxu0 %v2004
    %v2081 = vpop.f32.mrf.mxu0
    %v2082 = vadd.f32 0.0, %v2081
    %v2083 = vpop.f32.mrf.mxu0
    %2084 = vdwg.mxu0
    %v2085 = vmul.f32 %v1993, 0.1
    %v2086 = vmul.f32 %v2082, 0.1
    %v2087 = vmul.f32 %v2085, %v2085
    %v2088 = vsub.f32 %v2086, %v2087
    %v2089 = vadd.f32 %v2088, 1e-05
    %v2090 = vrsqrt.pop %v2089
    %v2091 = vmul.f32 %v1906, %v2090
    %v2092 = vmul.f32 %v2085, %v2091
    %v2093 = vsub.f32 %v1907, %v2092
    %v2095 = vsel %vm1182, %v2091, 0
    %2097 = vmatprep.subr.mxu0 0.0
    %2098 = vmatpush1.msra.mxu0 0.0
    %2099 = vmatprep.subr.mxu0 0.0
    %2100 = vmatpush1.msra.mxu0 0.0
    %2101 = vmatprep.subr.mxu0 0.0
    %2102 = vmatpush1.msra.mxu0 0.0
    %2103 = vmatprep.subr.mxu0 0.0
    %2104 = vmatpush1.msra.mxu0 0.0
    %2105 = vmatprep.subr.mxu0 0.0
    %2106 = vmatpush1.msra.mxu0 0.0
    %2107 = vmatprep.subr.mxu0 0.0
    %2108 = vmatpush1.msra.mxu0 0.0
    %2109 = vmatprep.subr.mxu0 0.0
    %2110 = vmatpush1.msra.mxu0 0.0
    %2111 = vmatprep.subr.mxu0 0.0
    %2112 = vmatpush1.msra.mxu0 0.0
    %2113 = vmatprep.subr.mxu0 0.0
    %2114 = vmatpush1.msra.mxu0 0.0
    %2115 = vmatprep.subr.mxu0 0.0
    %2116 = vmatpush1.msra.mxu0 0.0
    %2117 = vmatprep.subr.mxu0 0.0
    %2118 = vmatpush1.msra.mxu0 0.0
    %2119 = vmatprep.subr.mxu0 0.0
    %2120 = vmatpush1.msra.mxu0 0.0
    %2121 = vmatprep.subr.mxu0 %v1885
    %2122 = vmatpush1.msra.mxu0 %v1884
    %2123 = vmatprep.subr.mxu0 %v1883
    %2124 = vmatpush1.msra.mxu0 %v1882
    %2125 = vmatprep.subr.mxu0 %v1881
    %2126 = vmatpush1.msra.mxu0 %v1880
    %2127 = vmatprep.subr.mxu0 %v1879
    %2128 = vmatpush1.msra.mxu0 %v1878
    %2129 = vmatprep.subr.mxu0 0.0
    %2130 = vmatpush2.msra.mxu0 0.0
    %2131 = vmatprep.subr.mxu0 0.0
    %2132 = vmatpush2.msra.mxu0 0.0
    %2133 = vmatprep.subr.mxu0 0.0
    %2134 = vmatpush2.msra.mxu0 0.0
    %2135 = vmatprep.subr.mxu0 0.0
    %2136 = vmatpush2.msra.mxu0 0.0
    %2137 = vmatprep.subr.mxu0 0.0
    %2138 = vmatpush2.msra.mxu0 0.0
    %2139 = vmatprep.subr.mxu0 0.0
    %2140 = vmatpush2.msra.mxu0 0.0
    %2141 = vmatprep.subr.mxu0 0.0
    %2142 = vmatpush2.msra.mxu0 0.0
    %2143 = vmatprep.subr.mxu0 0.0
    %2144 = vmatpush2.msra.mxu0 0.0
    %2145 = vmatprep.subr.mxu0 0.0
    %2146 = vmatpush2.msra.mxu0 0.0
    %2147 = vmatprep.subr.mxu0 0.0
    %2148 = vmatpush2.msra.mxu0 0.0
    %2149 = vmatprep.subr.mxu0 0.0
    %2150 = vmatpush2.msra.mxu0 0.0
    %2151 = vmatprep.subr.mxu0 0.0
    %2152 = vmatpush2.msra.mxu0 0.0
    %2153 = vmatprep.subr.mxu0 0.0
    %2154 = vmatpush2.msra.mxu0 0.0
    %2155 = vmatprep.subr.mxu0 0.0
    %2156 = vmatpush2.msra.mxu0 0.0
    %2157 = vmatprep.subr.mxu0 0.0
    %2158 = vmatpush2.msra.mxu0 0.0
    %2159 = vmatprep.subr.mxu0 0.0
    %2160 = vmatpush2.msra.mxu0 0.0
    %2161 = vmatprep.mubr.f32.mxu0 0.0
    %2162 = vmatmul.mubr.f32.gmra.mxu0 %v2095
    %v2163 = vpop.f32.mrf.mxu0
    %v2164 = vadd.f32 0.0, %v2163
    %v2165 = vpop.f32.mrf.mxu0
    %v2166 = vadd.f32 0.0, %v2165
    %2167 = vdwg.mxu0
    %v2168 = vlaneseq
    %v2169 = vshrl.u32 %v2168, 7
    %v2170 = vsub.s32 0, %v2169
    %v2171 = vrot.slane %v2164, %v2170
    %v2172 = vlaneseq
    %v2173 = vshrl.u32 %v2172, 7
    %v2174 = vsub.s32 0, %v2173
    %v2175 = vrot.slane %v2166, %v2174
    %v2176 = vmul.f32 %v1872, %v2171
    %v2177 = vmul.f32 %v1874, %v2175
    %v2179 = vsel %vm1182, %v2093, 0
    %2181 = vmatprep.subr.mxu0 0.0
    %2182 = vmatpush1.msra.mxu0 0.0
    %2183 = vmatprep.subr.mxu0 0.0
    %2184 = vmatpush1.msra.mxu0 0.0
    %2185 = vmatprep.subr.mxu0 0.0
    %2186 = vmatpush1.msra.mxu0 0.0
    %2187 = vmatprep.subr.mxu0 0.0
    %2188 = vmatpush1.msra.mxu0 0.0
    %2189 = vmatprep.subr.mxu0 0.0
    %2190 = vmatpush1.msra.mxu0 0.0
    %2191 = vmatprep.subr.mxu0 0.0
    %2192 = vmatpush1.msra.mxu0 0.0
    %2193 = vmatprep.subr.mxu0 0.0
    %2194 = vmatpush1.msra.mxu0 0.0
    %2195 = vmatprep.subr.mxu0 0.0
    %2196 = vmatpush1.msra.mxu0 0.0
    %2197 = vmatprep.subr.mxu0 0.0
    %2198 = vmatpush1.msra.mxu0 0.0
    %2199 = vmatprep.subr.mxu0 0.0
    %2200 = vmatpush1.msra.mxu0 0.0
    %2201 = vmatprep.subr.mxu0 0.0
    %2202 = vmatpush1.msra.mxu0 0.0
    %2203 = vmatprep.subr.mxu0 0.0
    %2204 = vmatpush1.msra.mxu0 0.0
    %2205 = vmatprep.subr.mxu0 %v1885
    %2206 = vmatpush1.msra.mxu0 %v1884
    %2207 = vmatprep.subr.mxu0 %v1883
    %2208 = vmatpush1.msra.mxu0 %v1882
    %2209 = vmatprep.subr.mxu0 %v1881
    %2210 = vmatpush1.msra.mxu0 %v1880
    %2211 = vmatprep.subr.mxu0 %v1879
    %2212 = vmatpush1.msra.mxu0 %v1878
    %2213 = vmatprep.subr.mxu0 0.0
    %2214 = vmatpush2.msra.mxu0 0.0
    %2215 = vmatprep.subr.mxu0 0.0
    %2216 = vmatpush2.msra.mxu0 0.0
    %2217 = vmatprep.subr.mxu0 0.0
    %2218 = vmatpush2.msra.mxu0 0.0
    %2219 = vmatprep.subr.mxu0 0.0
    %2220 = vmatpush2.msra.mxu0 0.0
    %2221 = vmatprep.subr.mxu0 0.0
    %2222 = vmatpush2.msra.mxu0 0.0
    %2223 = vmatprep.subr.mxu0 0.0
    %2224 = vmatpush2.msra.mxu0 0.0
    %2225 = vmatprep.subr.mxu0 0.0
    %2226 = vmatpush2.msra.mxu0 0.0
    %2227 = vmatprep.subr.mxu0 0.0
    %2228 = vmatpush2.msra.mxu0 0.0
    %2229 = vmatprep.subr.mxu0 0.0
    %2230 = vmatpush2.msra.mxu0 0.0
    %2231 = vmatprep.subr.mxu0 0.0
    %2232 = vmatpush2.msra.mxu0 0.0
    %2233 = vmatprep.subr.mxu0 0.0
    %2234 = vmatpush2.msra.mxu0 0.0
    %2235 = vmatprep.subr.mxu0 0.0
    %2236 = vmatpush2.msra.mxu0 0.0
    %2237 = vmatprep.subr.mxu0 0.0
    %2238 = vmatpush2.msra.mxu0 0.0
    %2239 = vmatprep.subr.mxu0 0.0
    %2240 = vmatpush2.msra.mxu0 0.0
    %2241 = vmatprep.subr.mxu0 0.0
    %2242 = vmatpush2.msra.mxu0 0.0
    %2243 = vmatprep.subr.mxu0 0.0
    %2244 = vmatpush2.msra.mxu0 0.0
    %2245 = vmatprep.mubr.f32.mxu0 0.0
    %2246 = vmatmul.mubr.f32.gmra.mxu0 %v2179
    %v2247 = vpop.f32.mrf.mxu0
    %v2248 = vadd.f32 0.0, %v2247
    %v2249 = vpop.f32.mrf.mxu0
    %v2250 = vadd.f32 0.0, %v2249
    %2251 = vdwg.mxu0
    %v2252 = vlaneseq
    %v2253 = vshrl.u32 %v2252, 7
    %v2254 = vsub.s32 0, %v2253
    %v2255 = vrot.slane %v2248, %v2254
    %v2256 = vlaneseq
    %v2257 = vshrl.u32 %v2256, 7
    %v2258 = vsub.s32 0, %v2257
    %v2259 = vrot.slane %v2250, %v2258
    %v2260 = vadd.f32 %v2176, %v2255
    %v2261 = vadd.f32 %v2177, %v2259
    %v2262 = vpack.c.bf16 %v2260, %v2260
    %v2263 = vpack.c.bf16 %v2261, %v2261
    %v2264 = vld [vmem:[%s19] sm:$0xf]
    %v2265 = vld [vmem:[%s19 + $0x4] sm:$0xf]
    %v2266 = vld [vmem:[%s19 + $0x8] sm:$0xf]
    %v2267 = vld [vmem:[%s19 + $0xc] sm:$0xf]
    %v2268 = vld [vmem:[%s19 + $0x10] sm:$0xf]
    %v2269 = vld [vmem:[%s19 + $0x14] sm:$0xf]
    %v2270 = vld [vmem:[%s19 + $0x18] sm:$0xf]
    %v2271 = vld [vmem:[%s19 + $0x1c] sm:$0xf]
    %v2272 = vld [vmem:[%s19 + $0x20] sm:$0xf]
    %v2273 = vld [vmem:[%s19 + $0x24] sm:$0xf]
    %v2274 = vld [vmem:[%s19 + $0x28] sm:$0xf]
    %v2275 = vld [vmem:[%s19 + $0x2c] sm:$0xf]
    %v2276 = vld [vmem:[%s19 + $0x30] sm:$0xf]
    %v2277 = vld [vmem:[%s19 + $0x34] sm:$0xf]
    %v2278 = vld [vmem:[%s19 + $0x38] sm:$0xf]
    %v2279 = vld [vmem:[%s19 + $0x3c] sm:$0xf]
    %v2280 = vld [vmem:[%s19 + $0x40] sm:$0xf]
    %v2281 = vld [vmem:[%s19 + $0x44] sm:$0xf]
    %v2282 = vld [vmem:[%s19 + $0x48] sm:$0xf]
    %v2283 = vld [vmem:[%s19 + $0x4c] sm:$0xf]
    %v2284 = vld [vmem:[%s20] sm:$0x1]
    %v2286 = vlaneseq
    %v2287 = vshrl.u32 %v2286, 7
    %v2288 = vsub.s32 0, %v2287
    %v2289 = vrot.slane %v2284, %v2288
    %v2311 = vunpack.c.l.b16 %v2264
    %v2312 = vunpack.c.l.b16 %v2265
    %v2313 = vunpack.c.l.b16 %v2266
    %v2314 = vunpack.c.l.b16 %v2267
    %v2315 = vunpack.c.l.b16 %v2268
    %v2316 = vunpack.c.l.b16 %v2269
    %v2317 = vunpack.c.l.b16 %v2270
    %v2318 = vunpack.c.l.b16 %v2271
    %v2319 = vunpack.c.l.b16 %v2272
    %v2320 = vunpack.c.l.b16 %v2273
    %v2321 = vunpack.c.l.b16 %v2274
    %v2322 = vunpack.c.l.b16 %v2275
    %v2323 = vunpack.c.l.b16 %v2276
    %v2324 = vunpack.c.l.b16 %v2277
    %v2325 = vunpack.c.l.b16 %v2278
    %v2326 = vunpack.c.l.b16 %v2279
    %v2327 = vunpack.c.l.b16 %v2280
    %v2328 = vunpack.c.l.b16 %v2281
    %v2329 = vunpack.c.l.b16 %v2282
    %v2330 = vunpack.c.l.b16 %v2283
    %v2331 = vpack.c.b16 %v2312, %v2311
    %v2332 = vpack.c.b16 %v2314, %v2313
    %v2333 = vpack.c.b16 %v2316, %v2315
    %v2334 = vpack.c.b16 %v2318, %v2317
    %v2335 = vpack.c.b16 %v2320, %v2319
    %v2336 = vpack.c.b16 %v2322, %v2321
    %v2337 = vpack.c.b16 %v2324, %v2323
    %v2338 = vpack.c.b16 %v2326, %v2325
    %v2339 = vpack.c.b16 %v2328, %v2327
    %v2340 = vpack.c.b16 %v2330, %v2329
    %v2352 = vsel %vm1182, %v2263, 0
    %2354 = vmatprep.subr.bf16.mxu0 0
    %2355 = vmatpush1.bf16.msra.mxu0 %v2338
    %2356 = vmatprep.subr.bf16.mxu0 0
    %2357 = vmatpush1.bf16.msra.mxu0 %v2337
    %2358 = vmatprep.subr.bf16.mxu0 0
    %2359 = vmatpush1.bf16.msra.mxu0 %v2336
    %2360 = vmatprep.subr.bf16.mxu0 0
    %2361 = vmatpush1.bf16.msra.mxu0 %v2335
    %2362 = vmatprep.subr.bf16.mxu0 0
    %2363 = vmatpush1.bf16.msra.mxu0 %v2334
    %2364 = vmatprep.subr.bf16.mxu0 0
    %2365 = vmatpush1.bf16.msra.mxu0 %v2333
    %2366 = vmatprep.subr.bf16.mxu0 0
    %2367 = vmatpush1.bf16.msra.mxu0 %v2332
    %2368 = vmatprep.subr.bf16.mxu0 0
    %2369 = vmatpush1.bf16.msra.mxu0 %v2331
    %2370 = vmatprep.subr.bf16.mxu0 0
    %2371 = vmatpush2.bf16.msra.mxu0 0
    %2372 = vmatprep.subr.bf16.mxu0 0
    %2373 = vmatpush2.bf16.msra.mxu0 0
    %2374 = vmatprep.subr.bf16.mxu0 0
    %2375 = vmatpush2.bf16.msra.mxu0 0
    %2376 = vmatprep.subr.bf16.mxu0 0
    %2377 = vmatpush2.bf16.msra.mxu0 0
    %2378 = vmatprep.subr.bf16.mxu0 0
    %2379 = vmatpush2.bf16.msra.mxu0 0
    %2380 = vmatprep.subr.bf16.mxu0 0
    %2381 = vmatpush2.bf16.msra.mxu0 0
    %2382 = vmatprep.subr.bf16.mxu0 0
    %2383 = vmatpush2.bf16.msra.mxu0 %v2340
    %2384 = vmatprep.subr.bf16.mxu0 0
    %2385 = vmatpush2.bf16.msra.mxu0 %v2339
    %2386 = vmatprep.mubr.bf16.mxu0 %v2352
    %2387 = vmatmul.mubr.bf16.gmra.mxu0 %v2262
    %v2388 = vpop.f32.mrf.mxu0
    %v2389 = vadd.f32 %v2289, %v2388
    %v2390 = vpop.f32.mrf.mxu0
    %v2391 = vpop.f32.mrf.mxu0
    %v2392 = vpop.f32.mrf.mxu0
    %2393 = vdwg.mxu0
    %v2394 = vmax.f32 %v2389, 0.0
    %v2395 = vld [vmem:[%s21] sm:$0xff]
    %v2396 = vld [vmem:[%s21 + $0x8] sm:$0xff]
    %v2397 = vld [vmem:[%s21 + $0x10] sm:$0xff]
    %v2398 = vld [vmem:[%s21 + $0x18] sm:$0xff]
    %v2399 = vld [vmem:[%s22] sm:$0x1]
    %v2401 = vlaneseq
    %v2402 = vshrl.u32 %v2401, 7
    %v2403 = vsub.s32 0, %v2402
    %v2404 = vrot.slane %v2399, %v2403
    %v2407 = vsel %vm1182, %v2394, 0
    %2409 = vmatprep.subr.mxu0 0.0
    %2410 = vmatpush1.msra.mxu0 0.0
    %2411 = vmatprep.subr.mxu0 0.0
    %2412 = vmatpush1.msra.mxu0 0.0
    %2413 = vmatprep.subr.mxu0 0.0
    %2414 = vmatpush1.msra.mxu0 0.0
    %2415 = vmatprep.subr.mxu0 0.0
    %2416 = vmatpush1.msra.mxu0 0.0
    %2417 = vmatprep.subr.mxu0 0.0
    %2418 = vmatpush1.msra.mxu0 0.0
    %2419 = vmatprep.subr.mxu0 0.0
    %2420 = vmatpush1.msra.mxu0 0.0
    %2421 = vmatprep.subr.mxu0 0.0
    %2422 = vmatpush1.msra.mxu0 0.0
    %2423 = vmatprep.subr.mxu0 0.0
    %2424 = vmatpush1.msra.mxu0 0.0
    %2425 = vmatprep.subr.mxu0 0.0
    %2426 = vmatpush1.msra.mxu0 0.0
    %2427 = vmatprep.subr.mxu0 0.0
    %2428 = vmatpush1.msra.mxu0 0.0
    %2429 = vmatprep.subr.mxu0 0.0
    %2430 = vmatpush1.msra.mxu0 0.0
    %2431 = vmatprep.subr.mxu0 0.0
    %2432 = vmatpush1.msra.mxu0 0.0
    %2433 = vmatprep.subr.mxu0 0.0
    %2434 = vmatpush1.msra.mxu0 %v2398
    %2435 = vmatprep.subr.mxu0 0.0
    %2436 = vmatpush1.msra.mxu0 %v2397
    %2437 = vmatprep.subr.mxu0 0.0
    %2438 = vmatpush1.msra.mxu0 %v2396
    %2439 = vmatprep.subr.mxu0 0.0
    %2440 = vmatpush1.msra.mxu0 %v2395
    %2441 = vmatprep.subr.mxu0 0.0
    %2442 = vmatpush2.msra.mxu0 0.0
    %2443 = vmatprep.subr.mxu0 0.0
    %2444 = vmatpush2.msra.mxu0 0.0
    %2445 = vmatprep.subr.mxu0 0.0
    %2446 = vmatpush2.msra.mxu0 0.0
    %2447 = vmatprep.subr.mxu0 0.0
    %2448 = vmatpush2.msra.mxu0 0.0
    %2449 = vmatprep.subr.mxu0 0.0
    %2450 = vmatpush2.msra.mxu0 0.0
    %2451 = vmatprep.subr.mxu0 0.0
    %2452 = vmatpush2.msra.mxu0 0.0
    %2453 = vmatprep.subr.mxu0 0.0
    %2454 = vmatpush2.msra.mxu0 0.0
    %2455 = vmatprep.subr.mxu0 0.0
    %2456 = vmatpush2.msra.mxu0 0.0
    %2457 = vmatprep.subr.mxu0 0.0
    %2458 = vmatpush2.msra.mxu0 0.0
    %2459 = vmatprep.subr.mxu0 0.0
    %2460 = vmatpush2.msra.mxu0 0.0
    %2461 = vmatprep.subr.mxu0 0.0
    %2462 = vmatpush2.msra.mxu0 0.0
    %2463 = vmatprep.subr.mxu0 0.0
    %2464 = vmatpush2.msra.mxu0 0.0
    %2465 = vmatprep.subr.mxu0 0.0
    %2466 = vmatpush2.msra.mxu0 0.0
    %2467 = vmatprep.subr.mxu0 0.0
    %2468 = vmatpush2.msra.mxu0 0.0
    %2469 = vmatprep.subr.mxu0 0.0
    %2470 = vmatpush2.msra.mxu0 0.0
    %2471 = vmatprep.subr.mxu0 0.0
    %2472 = vmatpush2.msra.mxu0 0.0
    %2473 = vmatprep.mubr.f32.mxu0 0.0
    %2474 = vmatmul.mubr.f32.gmra.mxu0 %v2407
    %v2475 = vpop.f32.mrf.mxu0
    %v2476 = vadd.f32 %v2404, %v2475
    %v2477 = vpop.f32.mrf.mxu0
    %2478 = vdwg.mxu0
    %v2479 = vmul.f32 %v2476, %v2476
    %v2480 = vsel %vm1915, %v2479, 0.0
    %2481 = vadd.xlane.f32.xlu0 %v2480
    %v2482 = vpop.xlane.xlu0 %2481
    %v2483 = vmax.f32 %v2482, 1e-24
    %v2484 = vrsqrt.pop %v2483
    %v2485 = vmul.f32 %v2476, %v2484
    %v2486 = vld [vmem:[%s23] sm:$0xff]
    %v2487 = vld [vmem:[%s23 + $0x8] sm:$0xff]
    %v2488 = vld [vmem:[%s23 + $0x10] sm:$0xff]
    %v2489 = vld [vmem:[%s23 + $0x18] sm:$0xff]
    %v2490 = vld [vmem:[%s24] sm:$0x1]
    %v2492 = vlaneseq
    %v2493 = vshrl.u32 %v2492, 7
    %v2494 = vsub.s32 0, %v2493
    %v2495 = vrot.slane %v2490, %v2494
    %v2498 = vsel %vm1182, %v2485, 0
    %2500 = vmatprep.subr.mxu0 0.0
    %2501 = vmatpush1.msra.mxu0 0.0
    %2502 = vmatprep.subr.mxu0 0.0
    %2503 = vmatpush1.msra.mxu0 0.0
    %2504 = vmatprep.subr.mxu0 0.0
    %2505 = vmatpush1.msra.mxu0 0.0
    %2506 = vmatprep.subr.mxu0 0.0
    %2507 = vmatpush1.msra.mxu0 0.0
    %2508 = vmatprep.subr.mxu0 0.0
    %2509 = vmatpush1.msra.mxu0 0.0
    %2510 = vmatprep.subr.mxu0 0.0
    %2511 = vmatpush1.msra.mxu0 0.0
    %2512 = vmatprep.subr.mxu0 0.0
    %2513 = vmatpush1.msra.mxu0 0.0
    %2514 = vmatprep.subr.mxu0 0.0
    %2515 = vmatpush1.msra.mxu0 0.0
    %2516 = vmatprep.subr.mxu0 0.0
    %2517 = vmatpush1.msra.mxu0 0.0
    %2518 = vmatprep.subr.mxu0 0.0
    %2519 = vmatpush1.msra.mxu0 0.0
    %2520 = vmatprep.subr.mxu0 0.0
    %2521 = vmatpush1.msra.mxu0 0.0
    %2522 = vmatprep.subr.mxu0 0.0
    %2523 = vmatpush1.msra.mxu0 0.0
    %2524 = vmatprep.subr.mxu0 0.0
    %2525 = vmatpush1.msra.mxu0 %v2489
    %2526 = vmatprep.subr.mxu0 0.0
    %2527 = vmatpush1.msra.mxu0 %v2488
    %2528 = vmatprep.subr.mxu0 0.0
    %2529 = vmatpush1.msra.mxu0 %v2487
    %2530 = vmatprep.subr.mxu0 0.0
    %2531 = vmatpush1.msra.mxu0 %v2486
    %2532 = vmatprep.subr.mxu0 0.0
    %2533 = vmatpush2.msra.mxu0 0.0
    %2534 = vmatprep.subr.mxu0 0.0
    %2535 = vmatpush2.msra.mxu0 0.0
    %2536 = vmatprep.subr.mxu0 0.0
    %2537 = vmatpush2.msra.mxu0 0.0
    %2538 = vmatprep.subr.mxu0 0.0
    %2539 = vmatpush2.msra.mxu0 0.0
    %2540 = vmatprep.subr.mxu0 0.0
    %2541 = vmatpush2.msra.mxu0 0.0
    %2542 = vmatprep.subr.mxu0 0.0
    %2543 = vmatpush2.msra.mxu0 0.0
    %2544 = vmatprep.subr.mxu0 0.0
    %2545 = vmatpush2.msra.mxu0 0.0
    %2546 = vmatprep.subr.mxu0 0.0
    %2547 = vmatpush2.msra.mxu0 0.0
    %2548 = vmatprep.subr.mxu0 0.0
    %2549 = vmatpush2.msra.mxu0 0.0
    %2550 = vmatprep.subr.mxu0 0.0
    %2551 = vmatpush2.msra.mxu0 0.0
    %2552 = vmatprep.subr.mxu0 0.0
    %2553 = vmatpush2.msra.mxu0 0.0
    %2554 = vmatprep.subr.mxu0 0.0
    %2555 = vmatpush2.msra.mxu0 0.0
    %2556 = vmatprep.subr.mxu0 0.0
    %2557 = vmatpush2.msra.mxu0 0.0
    %2558 = vmatprep.subr.mxu0 0.0
    %2559 = vmatpush2.msra.mxu0 0.0
    %2560 = vmatprep.subr.mxu0 0.0
    %2561 = vmatpush2.msra.mxu0 0.0
    %2562 = vmatprep.subr.mxu0 0.0
    %2563 = vmatpush2.msra.mxu0 0.0
    %2564 = vmatprep.mubr.f32.mxu0 0.0
    %2565 = vmatmul.mubr.f32.gmra.mxu0 %v2498
    %v2566 = vpop.f32.mrf.mxu0
    %v2567 = vadd.f32 %v2495, %v2566
    %v2568 = vpop.f32.mrf.mxu0
    %2569 = vdwg.mxu0
    %vm2570 = vcmask 287744
    %2571 = vst.msk [vmem:[#allocation2] sm:$0x3] %vm2570, %v2567
    // Predicated region
    $region102: #{tpu_custom_call.1} parent=1 // pred_check
      _
    $region103: #{tpu_custom_call.1} parent=1 // pred_check_branch
      %2573 = sbr.rel (0) target = $region105
    $region104: #{tpu_custom_call.1} parent=1 // pred_region
      %s2575 = ssub.s32 32, 32
      %2576 = vsyncadd [#allocation3], %s2575
      %s2578 = sshll.u32 [#allocation2], 4
      %s2579 = int_to_ptr.vmem [resolvable:$true] %s2578
      %2581 = dma.vmem_to_hbm [thread:$0]  %s2579, 32, %s25, [#allocation3]
    $region105: #{tpu_custom_call.1} parent=1 // pred_fallthru
      _
    // Predicated region
    $region106: #{tpu_custom_call.1} parent=1 // pred_check
      _
    $region107: #{tpu_custom_call.1} parent=1 // pred_check_branch
      %2583 = sbr.rel (0) target = $region109
    $region108: #{tpu_custom_call.1} parent=1 // pred_region
      %2584 = dma.done [#allocation3], 32
    $region109: #{tpu_custom_call.1} parent=1 // pred_fallthru
      _
    %2585 = vsyncpa [#allocation3], 1

</llo_original>
